<compile_context>
chip_gen: v5e
topology: v5e:2x2
jax: 0.10.0
libtpu: 0.0.40
codegen_flags: <defaults>
</compile_context>

<pallas_src>
import functools
import math

import jax
import jax.numpy as jnp
import numpy as np
from jax.experimental import pallas as pl
from jax.experimental.pallas import tpu as pltpu

EPS = 1e-5  # torch nn.LayerNorm default


# ----------------------------- kernel helpers ------------------------------

def _layer_norm(x, g, b):
    mu = jnp.mean(x, axis=-1, keepdims=True)
    var = jnp.mean((x - mu) ** 2, axis=-1, keepdims=True)
    return (x - mu) * jax.lax.rsqrt(var + EPS) * g + b


def clip_stack_kernel(x_ref, ln1g, ln1b, wqkv, wout, bout,
                      ln2g, ln2b, w1, b1, w2, b2,
                      o_ref, x_sc, attn_sc, *, n_head, n_mlp_chunks):
    """Runs ONE CLIPLayer per grid step; the layer index is grid axis 1.

    x block: (bblk, S, D).  Activations are carried across the layer axis in
    the fp32 VMEM scratch `x_sc`; the HBM input is read only at layer 0 and the
    HBM output is written only at the last layer.  Matmul inputs are bf16
    (weights stored bf16, 1/sqrt(dh) pre-folded into the Q columns of wqkv),
    accumulation is fp32; LN / softmax / QuickGELU math stays fp32.
    """
    layer = pl.program_id(1)
    n_layers = pl.num_programs(1)
    bblk, S, D = x_ref.shape
    dh = D // n_head
    M = bblk * S

    @pl.when(layer == 0)
    def _():
        x_sc[...] = x_ref[...]

    x = x_sc[...].reshape(M, D)                                  # free view (S % 8 == 0)

    # ---- LN1 + causal self-attention (no in_proj bias) ----
    h = _layer_norm(x, ln1g[0], ln1b[0])
    qkv = jnp.dot(h.astype(jnp.bfloat16), wqkv[0],
                  preferred_element_type=jnp.float32).reshape(bblk, S, 3 * D)
    q = qkv[:, :, :D].astype(jnp.bfloat16)                       # wide casts, once
    k = qkv[:, :, D:2 * D].astype(jnp.bfloat16)
    v = qkv[:, :, 2 * D:].astype(jnp.bfloat16)

    row = jax.lax.broadcasted_iota(jnp.int32, (S, S), 0)
    col = jax.lax.broadcasted_iota(jnp.int32, (S, S), 1)
    bias = jnp.where(col <= row, 0.0, -1e30).astype(jnp.float32)
    bias = pl.broadcast_to(bias[None, :, :], (bblk, S, S))       # built ONCE per step

    for hh in range(n_head):                                     # per head, batched over bblk
        sl = slice(hh * dh, (hh + 1) * dh)
        s = jnp.einsum("bqd,bkd->bqk", q[:, :, sl], k[:, :, sl],
                       preferred_element_type=jnp.float32) + bias
        m = jnp.max(s, axis=-1, keepdims=True)
        e = jnp.exp(s - m)
        p = e * pl.reciprocal(jnp.sum(e, axis=-1, keepdims=True), approx=True)
        o_h = jnp.einsum("bqk,bkd->bqd", p.astype(jnp.bfloat16), v[:, :, sl],
                         preferred_element_type=jnp.float32)
        attn_sc[:, :, sl] = o_h.astype(jnp.bfloat16)             # eager write-out, no concat

    attn = jnp.dot(attn_sc[...].reshape(M, D), wout[0],
                   preferred_element_type=jnp.float32) + bout[0]
    x = x + attn

    # ---- LN2 + QuickGELU MLP, hidden dim chunked (bounds fp32 intermediate) ----
    h2 = _layer_norm(x, ln2g[0], ln2b[0]).astype(jnp.bfloat16)
    hid = w1.shape[-1]
    chunk = hid // n_mlp_chunks
    mlp = jnp.zeros((M, D), jnp.float32)
    for c in range(n_mlp_chunks):
        c0 = c * chunk
        a = jnp.dot(h2, w1[0, :, c0:c0 + chunk],
                    preferred_element_type=jnp.float32) + b1[0, :, c0:c0 + chunk]
        a = a * jax.nn.sigmoid(1.702 * a)                        # QuickGELU (fp32, EUP)
        mlp = mlp + jnp.dot(a.astype(jnp.bfloat16), w2[0, c0:c0 + chunk, :],
                            preferred_element_type=jnp.float32)
    x = x + mlp + b2[0]

    x_sc[...] = x.reshape(bblk, S, D)                            # carry to next layer

    @pl.when(layer == n_layers - 1)
    def _():
        o_ref[...] = x.reshape(bblk, S, D)


# ------------------------------ pallas wrapper ------------------------------

def _pick_bblk(batch):
    # <= 4 sequences per grid step: fills the MXU M dimension (4 * 80 = 320 rows
    # at real CLIP sizes) while leaving VMEM headroom on v7x (64 MiB/TC) and
    # keeping >= 2 grid steps (dual-TC sharding) whenever batch >= 2.
    for cand in (4, 2, 1):
        if batch % cand == 0 and batch // cand >= 2:
            return cand
    for cand in (4, 2, 1):
        if batch % cand == 0:
            return cand
    return 1


def _pick_mlp_chunks(hidden):
    for nc in (4, 2):
        if hidden % nc == 0 and (hidden // nc) % 128 == 0:
            return nc
    return 1


def clip_encoder(x, kp, n_head, bblk=None, n_mlp_chunks=None):
    """Run the full CLIP layer stack on x (B, S, D) with one pallas_call."""
    B, S, D = x.shape
    n_layers = kp["w_qkv"].shape[0]
    hid = kp["w1"].shape[-1]

    # Pad seq length to a sublane multiple (77 -> 80 for real CLIP): makes the
    # (bblk, S, D) -> (bblk*S, D) flatten a free view and row ops lane/sublane
    # friendly.  Causal masking guarantees real rows never attend to the zero
    # pad rows, so results for real positions are unchanged.
    S_pad = ((S + 7) // 8) * 8
    if S_pad != S:
        x = jnp.pad(x, ((0, 0), (0, S_pad - S), (0, 0)))

    if bblk is None:
        bblk = _pick_bblk(B)
    assert B % bblk == 0, (B, bblk)
    nb = B // bblk
    if n_mlp_chunks is None:
        n_mlp_chunks = _pick_mlp_chunks(hid)
    assert hid % n_mlp_chunks == 0, (hid, n_mlp_chunks)

    names = ["ln1_g", "ln1_b", "w_qkv", "w_out", "b_out",
             "ln2_g", "ln2_b", "w1", "b1", "w2", "b2"]
    weights = [kp[n] for n in names]

    # Stacked (L, ...) weights are streamed through the BlockSpec pipeline one
    # layer per grid step -> layer l+1's weight DMA overlaps layer l's compute.
    def _w_spec(w):
        zeros = (0,) * (w.ndim - 1)
        return pl.BlockSpec((1,) + tuple(w.shape[1:]), lambda b, l: (l,) + zeros)

    weight_specs = [_w_spec(w) for w in weights]
    w_bytes = sum(int(w.size) * w.dtype.itemsize for w in weights)

    cost = pl.CostEstimate(
        flops=int(2 * B * S_pad * D * D * 12 * n_layers
                  + 4 * B * S_pad * S_pad * D * n_layers),
        transcendentals=int(B * S_pad * S_pad * n_head * n_layers
                            + B * S_pad * hid * n_layers),
        bytes_accessed=int(nb * w_bytes + 2 * B * S_pad * D * 4),
    )

    out = pl.pallas_call(
        functools.partial(clip_stack_kernel, n_head=n_head,
                          n_mlp_chunks=n_mlp_chunks),
        out_shape=jax.ShapeDtypeStruct((B, S_pad, D), jnp.float32),
        grid=(nb, n_layers),
        in_specs=[pl.BlockSpec((bblk, S_pad, D), lambda b, l: (b, 0, 0))]
                 + weight_specs,
        out_specs=pl.BlockSpec((bblk, S_pad, D), lambda b, l: (b, 0, 0)),
        scratch_shapes=[pltpu.VMEM((bblk, S_pad, D), jnp.float32),   # layer carry
                        pltpu.VMEM((bblk, S_pad, D), jnp.bfloat16)], # attn heads
        compiler_params=pltpu.CompilerParams(
            dimension_semantics=("parallel", "arbitrary"),
            # ~28 MiB double-buffered bf16 weights + a few MiB of activations /
            # fp32 temporaries at bblk <= 4: fits v7x's 64 MiB physical VMEM
            # with headroom; comfortable on v5e/v6e's 128 MiB.
            vmem_limit_bytes=56 * 1024 * 1024,
        ),
        cost_estimate=cost,
    )(x, *weights)

    return out[:, :S, :] if S_pad != S else out


def clip_forward(tokens, kp, n_head, bblk=None, n_mlp_chunks=None):
    # CLIPEmbedding: token embedding gather + learned position embedding (glue)
    x = (kp["token_emb"][tokens] + kp["pos_emb"][None, :, :]).astype(jnp.float32)
    x = clip_encoder(x, kp, n_head, bblk=bblk, n_mlp_chunks=n_mlp_chunks)
    # Only output[:, 0, :] is consumed (matches the reference module), and
    # LayerNorm is per-position -> apply the final LayerNorm to token 0 only.
    h0 = x[:, 0, :]
    mu = h0.mean(-1, keepdims=True)
    var = ((h0 - mu) ** 2).mean(-1, keepdims=True)
    return (h0 - mu) * jax.lax.rsqrt(var + EPS) * kp["ln_g"] + kp["ln_b"]


# ------------------------------ parameter setup -----------------------------

def init_params(key, n_vocab, n_embd, n_token, n_layers):
    keys = jax.random.split(key, 1 + 4 * n_layers)
    ki = iter(keys)

    def nrm(shape, scale=0.02, dtype=jnp.bfloat16):
        w = scale * jax.random.normal(next(ki), shape, dtype=jnp.float32)
        return w.astype(dtype)

    params = {
        "token_emb": nrm((n_vocab, n_embd), 1.0, jnp.float32),    # nn.Embedding
        "pos_emb": jnp.zeros((n_token, n_embd), jnp.float32),     # torch.zeros
        "ln_g": jnp.ones((1, n_embd), jnp.float32),
        "ln_b": jnp.zeros((1, n_embd), jnp.float32),
        "layers": [],
    }
    for _ in range(n_layers):
        params["layers"].append({
            "ln1_g": jnp.ones((1, n_embd), jnp.float32),
            "ln1_b": jnp.zeros((1, n_embd), jnp.float32),
            "w_qkv": nrm((n_embd, 3 * n_embd)),                   # in_proj, no bias (bf16)
            "w_out": nrm((n_embd, n_embd)),
            "b_out": jnp.zeros((1, n_embd), jnp.float32),
            "ln2_g": jnp.ones((1, n_embd), jnp.float32),
            "ln2_b": jnp.zeros((1, n_embd), jnp.float32),
            "w1": nrm((n_embd, 4 * n_embd)),
            "b1": jnp.zeros((1, 4 * n_embd), jnp.float32),
            "w2": nrm((4 * n_embd, n_embd)),
            "b2": jnp.zeros((1, n_embd), jnp.float32),
        })
    return params


def prepare_kernel_params(params, n_head):
    """One-time transform for the kernel: stack per-layer weights along a
    leading layer axis (so they can be streamed one layer per grid step) and
    fold the 1/sqrt(head_dim) attention scale into the Q columns of w_qkv."""
    layers = params["layers"]
    D = layers[0]["w_qkv"].shape[0]
    dh = D // n_head
    scale = 1.0 / math.sqrt(dh)

    def stack(name):
        return jnp.stack([lp[name] for lp in layers], axis=0)

    w_qkv = stack("w_qkv")
    wq = (w_qkv[:, :, :D].astype(jnp.float32) * scale).astype(w_qkv.dtype)
    w_qkv = jnp.concatenate([wq, w_qkv[:, :, D:]], axis=-1)

    kp = {name: stack(name) for name in
          ["ln1_g", "ln1_b", "w_out", "b_out", "ln2_g", "ln2_b",
           "w1", "b1", "w2", "b2"]}
    kp["w_qkv"] = w_qkv
    kp["token_emb"] = params["token_emb"]
    kp["pos_emb"] = params["pos_emb"]
    kp["ln_g"] = params["ln_g"]
    kp["ln_b"] = params["ln_b"]
    return kp


# --------------------------- pure-JAX reference ------------------------------

def _ref_layer(x, lp, n_head):
    B, S, D = x.shape
    dh = D // n_head

    def ln(v, g, b):
        mu = v.mean(-1, keepdims=True)
        var = ((v - mu) ** 2).mean(-1, keepdims=True)
        return (v - mu) / jnp.sqrt(var + EPS) * g + b

    h = ln(x, lp["ln1_g"], lp["ln1_b"])
    qkv = h @ lp["w_qkv"].astype(jnp.float32)
    q, k, v = jnp.split(qkv, 3, axis=-1)
    q = q.reshape(B, S, n_head, dh).transpose(0, 2, 1, 3)
    k = k.reshape(B, S, n_head, dh).transpose(0, 2, 1, 3)
    v = v.reshape(B, S, n_head, dh).transpose(0, 2, 1, 3)
    s = jnp.einsum("bhqd,bhkd->bhqk", q, k)
    mask = jnp.triu(jnp.ones((S, S), bool), 1)
    s = jnp.where(mask, -jnp.inf, s) / math.sqrt(dh)
    p = jax.nn.softmax(s, axis=-1)
    o = jnp.einsum("bhqk,bhkd->bhqd", p, v).transpose(0, 2, 1, 3).reshape(B, S, D)
    x = x + (o @ lp["w_out"].astype(jnp.float32) + lp["b_out"])
    h2 = ln(x, lp["ln2_g"], lp["ln2_b"])
    a = h2 @ lp["w1"].astype(jnp.float32) + lp["b1"]
    a = a * jax.nn.sigmoid(1.702 * a)
    return x + (a @ lp["w2"].astype(jnp.float32) + lp["b2"])


def _ref_forward(tokens, params, n_head):
    x = params["token_emb"][tokens] + params["pos_emb"][None]
    for lp in params["layers"]:
        x = _ref_layer(x, lp, n_head)
    mu = x.mean(-1, keepdims=True)
    var = ((x - mu) ** 2).mean(-1, keepdims=True)
    x = (x - mu) / jnp.sqrt(var + EPS) * params["ln_g"] + params["ln_b"]
    return x[:, 0, :]


# ----------------------------------- main ------------------------------------

if __name__ == "__main__":
    # Small config consistent with the module's structure
    # (real CLIP: vocab=49408, embd=768, token=77, heads=12, layers=12).
    # S=12 also exercises the pad-to-sublane path (12 -> 16), mirroring 77->80.
    B, S, D, H, L, V = 2, 12, 64, 4, 2, 100

    key = jax.random.PRNGKey(0)
    pkey, tkey = jax.random.split(key)
    params = init_params(pkey, n_vocab=V, n_embd=D, n_token=S, n_layers=L)
    tokens = jax.random.randint(tkey, (B, S), 0, V, dtype=jnp.int32)

    kparams = prepare_kernel_params(params, n_head=H)   # one-time weight prep

    fwd = jax.jit(functools.partial(clip_forward, n_head=H))
    out = jax.block_until_ready(fwd(tokens, kparams))
    assert out.shape == (B, D) and out.dtype == jnp.float32

    ref = jax.block_until_ready(_ref_forward(tokens, params, n_head=H))
    if not np.allclose(np.asarray(out), np.asarray(ref), atol=3e-2, rtol=3e-2):
        err = float(np.max(np.abs(np.asarray(out) - np.asarray(ref))))
        raise AssertionError(
            f"Pallas kernel output mismatch vs JAX reference (max abs err {err})")

    # Also exercise the multi-sequence-per-grid-step path (bblk=2, single batch
    # block over the whole batch).
    out2 = jax.block_until_ready(clip_forward(tokens, kparams, n_head=H, bblk=2))
    if not np.allclose(np.asarray(out2), np.asarray(ref), atol=3e-2, rtol=3e-2):
        raise AssertionError("Pallas kernel (bblk=2) output mismatch vs JAX reference")

    print("KERNEL_OK")
</pallas_src>

<mosaic_0001>
module attributes {stable_mosaic.version = 11 : i64} {
  func.func @clip_stack_kernel(%arg0: i32, %arg1: i32, %arg2: memref<1x16x64xf32, #tpu.memory_space<vmem>>, %arg3: memref<1x1x64xf32, #tpu.memory_space<vmem>>, %arg4: memref<1x1x64xf32, #tpu.memory_space<vmem>>, %arg5: memref<1x64x192xbf16, #tpu.memory_space<vmem>>, %arg6: memref<1x64x64xbf16, #tpu.memory_space<vmem>>, %arg7: memref<1x1x64xf32, #tpu.memory_space<vmem>>, %arg8: memref<1x1x64xf32, #tpu.memory_space<vmem>>, %arg9: memref<1x1x64xf32, #tpu.memory_space<vmem>>, %arg10: memref<1x64x256xbf16, #tpu.memory_space<vmem>>, %arg11: memref<1x1x256xf32, #tpu.memory_space<vmem>>, %arg12: memref<1x256x64xbf16, #tpu.memory_space<vmem>>, %arg13: memref<1x1x64xf32, #tpu.memory_space<vmem>>, %arg14: memref<1x16x64xf32, #tpu.memory_space<vmem>>, %arg15: memref<1x16x64xf32, #tpu.memory_space<vmem>>, %arg16: memref<1x16x64xbf16, #tpu.memory_space<vmem>>) attributes {dimension_semantics = [#tpu.dimension_semantics<parallel>, #tpu.dimension_semantics<arbitrary>], iteration_bounds = array<i64: 2, 2>, scalar_prefetch = 0 : i64, scratch_operands = 2 : i64, tpu.core_type = #tpu.core_type<tc>, window_params = [{transform_indices = @transform_0, window_bounds = array<i64: 1, 16, 64>}, {transform_indices = @transform_1, window_bounds = array<i64: 1, 1, 64>}, {transform_indices = @transform_2, window_bounds = array<i64: 1, 1, 64>}, {transform_indices = @transform_3, window_bounds = array<i64: 1, 64, 192>}, {transform_indices = @transform_4, window_bounds = array<i64: 1, 64, 64>}, {transform_indices = @transform_5, window_bounds = array<i64: 1, 1, 64>}, {transform_indices = @transform_6, window_bounds = array<i64: 1, 1, 64>}, {transform_indices = @transform_7, window_bounds = array<i64: 1, 1, 64>}, {transform_indices = @transform_8, window_bounds = array<i64: 1, 64, 256>}, {transform_indices = @transform_9, window_bounds = array<i64: 1, 1, 256>}, {transform_indices = @transform_10, window_bounds = array<i64: 1, 256, 64>}, {transform_indices = @transform_11, window_bounds = array<i64: 1, 1, 64>}, {transform_indices = @transform_12, window_bounds = array<i64: 1, 16, 64>}]} {
    %c0_i32 = arith.constant 0 : i32
    %0 = arith.cmpi eq, %arg1, %c0_i32 : i32
    %1 = arith.extui %0 : i1 to i32
    %c0_i32_0 = arith.constant 0 : i32
    %2 = arith.cmpi ne, %1, %c0_i32_0 : i32
    scf.if %2 {
      %c0_98 = arith.constant 0 : index
      %c0_99 = arith.constant 0 : index
      %c0_100 = arith.constant 0 : index
      %213 = vector.load %arg2[%c0_98, %c0_99, %c0_100] : memref<1x16x64xf32, #tpu.memory_space<vmem>>, vector<1x16x64xf32>
      %c0_101 = arith.constant 0 : index
      %c0_102 = arith.constant 0 : index
      %c0_103 = arith.constant 0 : index
      %214 = vector.load %arg15[%c0_101, %c0_102, %c0_103] : memref<1x16x64xf32, #tpu.memory_space<vmem>>, vector<1x16x64xf32>
      tpu.vector_store %arg15[%c0_101, %c0_102, %c0_103], %213 {strides = array<i32>} : memref<1x16x64xf32, #tpu.memory_space<vmem>>, vector<1x16x64xf32>,
    } else {
    }
    %c0 = arith.constant 0 : index
    %c0_1 = arith.constant 0 : index
    %c0_2 = arith.constant 0 : index
    %3 = vector.load %arg15[%c0, %c0_1, %c0_2] : memref<1x16x64xf32, #tpu.memory_space<vmem>>, vector<1x16x64xf32>
    %4 = vector.shape_cast %3 : vector<1x16x64xf32> to vector<16x64xf32>
    %c0_3 = arith.constant 0 : index
    %c0_4 = arith.constant 0 : index
    %c0_5 = arith.constant 0 : index
    %5 = vector.load %arg3[%c0_3, %c0_4, %c0_5] : memref<1x1x64xf32, #tpu.memory_space<vmem>>, vector<1x1x64xf32>
    %6 = vector.shape_cast %5 : vector<1x1x64xf32> to vector<1x64xf32>
    %c0_6 = arith.constant 0 : index
    %c0_7 = arith.constant 0 : index
    %c0_8 = arith.constant 0 : index
    %7 = vector.load %arg4[%c0_6, %c0_7, %c0_8] : memref<1x1x64xf32, #tpu.memory_space<vmem>>, vector<1x1x64xf32>
    %8 = vector.shape_cast %7 : vector<1x1x64xf32> to vector<1x64xf32>
    %cst = arith.constant dense<0.000000e+00> : vector<16xf32>
    %9 = vector.multi_reduction <add>, %4, %cst [1] : vector<16x64xf32> to vector<16xf32>
    %10 = vector.shape_cast %9 : vector<16xf32> to vector<16x1xf32>
    %cst_9 = arith.constant 6.400000e+01 : f32
    %11 = vector.broadcast %cst_9 : f32 to vector<16x1xf32>
    %12 = arith.divf %10, %11 : vector<16x1xf32>
    %13 = vector.broadcast %12 : vector<16x1xf32> to vector<16x64xf32>
    %14 = arith.subf %4, %13 : vector<16x64xf32>
    %15 = arith.mulf %14, %14 : vector<16x64xf32>
    %cst_10 = arith.constant dense<0.000000e+00> : vector<16xf32>
    %16 = vector.multi_reduction <add>, %15, %cst_10 [1] : vector<16x64xf32> to vector<16xf32>
    %17 = vector.shape_cast %16 : vector<16xf32> to vector<16x1xf32>
    %cst_11 = arith.constant 6.400000e+01 : f32
    %18 = vector.broadcast %cst_11 : f32 to vector<16x1xf32>
    %19 = arith.divf %17, %18 : vector<16x1xf32>
    %20 = vector.broadcast %12 : vector<16x1xf32> to vector<16x64xf32>
    %21 = arith.subf %4, %20 : vector<16x64xf32>
    %cst_12 = arith.constant 9.99999974E-6 : f32
    %22 = vector.broadcast %cst_12 : f32 to vector<16x1xf32>
    %23 = arith.addf %19, %22 : vector<16x1xf32>
    %24 = math.rsqrt %23 : vector<16x1xf32>
    %25 = vector.broadcast %24 : vector<16x1xf32> to vector<16x64xf32>
    %26 = arith.mulf %21, %25 : vector<16x64xf32>
    %27 = vector.broadcast %6 : vector<1x64xf32> to vector<16x64xf32>
    %28 = arith.mulf %26, %27 : vector<16x64xf32>
    %29 = vector.broadcast %8 : vector<1x64xf32> to vector<16x64xf32>
    %30 = arith.addf %28, %29 : vector<16x64xf32>
    %31 = arith.truncf %30 : vector<16x64xf32> to vector<16x64xbf16>
    %c0_13 = arith.constant 0 : index
    %c0_14 = arith.constant 0 : index
    %c0_15 = arith.constant 0 : index
    %32 = vector.load %arg5[%c0_13, %c0_14, %c0_15] : memref<1x64x192xbf16, #tpu.memory_space<vmem>>, vector<1x64x192xbf16>
    %33 = vector.shape_cast %32 : vector<1x64x192xbf16> to vector<64x192xbf16>
    %cst_16 = arith.constant dense<0.000000e+00> : vector<16x192xf32>
    %34 = tpu.matmul %31, %33, %cst_16 {dimension_numbers = #tpu.dot_dimension_numbers<[1], [0], [0], [1], [0, 0, 1, 1], [], []>} : vector<16x64xbf16>, vector<64x192xbf16>, vector<16x192xf32> -> vector<16x192xf32>
    %35 = vector.shape_cast %34 : vector<16x192xf32> to vector<1x16x192xf32>
    %36 = vector.extract_strided_slice %35 {offsets = [0, 0, 0], sizes = [1, 16, 64], strides = [1, 1, 1]} : vector<1x16x192xf32> to vector<1x16x64xf32>
    %37 = arith.truncf %36 : vector<1x16x64xf32> to vector<1x16x64xbf16>
    %38 = vector.extract_strided_slice %35 {offsets = [0, 0, 64], sizes = [1, 16, 64], strides = [1, 1, 1]} : vector<1x16x192xf32> to vector<1x16x64xf32>
    %39 = arith.truncf %38 : vector<1x16x64xf32> to vector<1x16x64xbf16>
    %40 = vector.extract_strided_slice %35 {offsets = [0, 0, 128], sizes = [1, 16, 64], strides = [1, 1, 1]} : vector<1x16x192xf32> to vector<1x16x64xf32>
    %41 = arith.truncf %40 : vector<1x16x64xf32> to vector<1x16x64xbf16>
    %42 = tpu.iota {dimensions = array<i32: 0>} : vector<16x16xi32>
    %43 = tpu.iota {dimensions = array<i32: 1>} : vector<16x16xi32>
    %44 = arith.cmpi sle, %43, %42 : vector<16x16xi32>
    %cst_17 = arith.constant 0.000000e+00 : f32
    %cst_18 = arith.constant -1.000000e+30 : f32
    %45 = vector.broadcast %cst_17 : f32 to vector<16x16xf32>
    %46 = vector.broadcast %cst_18 : f32 to vector<16x16xf32>
    %47 = arith.select %44, %45, %46 : vector<16x16xi1>, vector<16x16xf32>
    %48 = vector.shape_cast %47 : vector<16x16xf32> to vector<1x16x16xf32>
    %49 = vector.extract_strided_slice %37 {offsets = [0, 0, 0], sizes = [1, 16, 16], strides = [1, 1, 1]} : vector<1x16x64xbf16> to vector<1x16x16xbf16>
    %50 = vector.extract_strided_slice %39 {offsets = [0, 0, 0], sizes = [1, 16, 16], strides = [1, 1, 1]} : vector<1x16x64xbf16> to vector<1x16x16xbf16>
    "tpu.trace_start"() <{level = 10 : i32, message = "bqd,bkd->bqk"}> : () -> ()
    %cst_19 = arith.constant dense<0.000000e+00> : vector<1x16x16xf32>
    %51 = tpu.matmul %49, %50, %cst_19 {dimension_numbers = #tpu.dot_dimension_numbers<[2], [2], [1], [1], [0, 0, 0, 1, 1, 1], [0], [0]>} : vector<1x16x16xbf16>, vector<1x16x16xbf16>, vector<1x16x16xf32> -> vector<1x16x16xf32>
    "tpu.trace_stop"() : () -> ()
    %52 = arith.addf %51, %48 : vector<1x16x16xf32>
    %cst_20 = arith.constant dense<0xFF800000> : vector<1x16xf32>
    %53 = vector.multi_reduction <maximumf>, %52, %cst_20 [2] : vector<1x16x16xf32> to vector<1x16xf32>
    %54 = vector.shape_cast %53 : vector<1x16xf32> to vector<1x16x1xf32>
    %55 = vector.broadcast %54 : vector<1x16x1xf32> to vector<1x16x16xf32>
    %56 = arith.subf %52, %55 : vector<1x16x16xf32>
    %57 = math.exp %56 : vector<1x16x16xf32>
    %cst_21 = arith.constant dense<0.000000e+00> : vector<1x16xf32>
    %58 = vector.multi_reduction <add>, %57, %cst_21 [2] : vector<1x16x16xf32> to vector<1x16xf32>
    %59 = vector.shape_cast %58 : vector<1x16xf32> to vector<1x16x1xf32>
    %60 = tpu.reciprocal %59 {approx = true} : vector<1x16x1xf32> -> vector<1x16x1xf32>
    %61 = vector.broadcast %60 : vector<1x16x1xf32> to vector<1x16x16xf32>
    %62 = arith.mulf %57, %61 : vector<1x16x16xf32>
    %63 = arith.truncf %62 : vector<1x16x16xf32> to vector<1x16x16xbf16>
    %64 = vector.extract_strided_slice %41 {offsets = [0, 0, 0], sizes = [1, 16, 16], strides = [1, 1, 1]} : vector<1x16x64xbf16> to vector<1x16x16xbf16>
    "tpu.trace_start"() <{level = 10 : i32, message = "bqk,bkd->bqd"}> : () -> ()
    %cst_22 = arith.constant dense<0.000000e+00> : vector<1x16x16xf32>
    %65 = tpu.matmul %63, %64, %cst_22 {dimension_numbers = #tpu.dot_dimension_numbers<[2], [1], [1], [2], [0, 0, 0, 1, 1, 2], [0], [0]>} : vector<1x16x16xbf16>, vector<1x16x16xbf16>, vector<1x16x16xf32> -> vector<1x16x16xf32>
    "tpu.trace_stop"() : () -> ()
    %66 = arith.truncf %65 : vector<1x16x16xf32> to vector<1x16x16xbf16>
    %c0_23 = arith.constant 0 : index
    %c0_24 = arith.constant 0 : index
    %c0_25 = arith.constant 0 : index
    %67 = vector.load %arg16[%c0_23, %c0_24, %c0_25] : memref<1x16x64xbf16, #tpu.memory_space<vmem>>, vector<1x16x16xbf16>
    tpu.vector_store %arg16[%c0_23, %c0_24, %c0_25], %66 {strides = array<i32>} : memref<1x16x64xbf16, #tpu.memory_space<vmem>>, vector<1x16x16xbf16>,
    %68 = vector.extract_strided_slice %37 {offsets = [0, 0, 16], sizes = [1, 16, 16], strides = [1, 1, 1]} : vector<1x16x64xbf16> to vector<1x16x16xbf16>
    %69 = vector.extract_strided_slice %39 {offsets = [0, 0, 16], sizes = [1, 16, 16], strides = [1, 1, 1]} : vector<1x16x64xbf16> to vector<1x16x16xbf16>
    "tpu.trace_start"() <{level = 10 : i32, message = "bqd,bkd->bqk"}> : () -> ()
    %cst_26 = arith.constant dense<0.000000e+00> : vector<1x16x16xf32>
    %70 = tpu.matmul %68, %69, %cst_26 {dimension_numbers = #tpu.dot_dimension_numbers<[2], [2], [1], [1], [0, 0, 0, 1, 1, 1], [0], [0]>} : vector<1x16x16xbf16>, vector<1x16x16xbf16>, vector<1x16x16xf32> -> vector<1x16x16xf32>
    "tpu.trace_stop"() : () -> ()
    %71 = arith.addf %70, %48 : vector<1x16x16xf32>
    %cst_27 = arith.constant dense<0xFF800000> : vector<1x16xf32>
    %72 = vector.multi_reduction <maximumf>, %71, %cst_27 [2] : vector<1x16x16xf32> to vector<1x16xf32>
    %73 = vector.shape_cast %72 : vector<1x16xf32> to vector<1x16x1xf32>
    %74 = vector.broadcast %73 : vector<1x16x1xf32> to vector<1x16x16xf32>
    %75 = arith.subf %71, %74 : vector<1x16x16xf32>
    %76 = math.exp %75 : vector<1x16x16xf32>
    %cst_28 = arith.constant dense<0.000000e+00> : vector<1x16xf32>
    %77 = vector.multi_reduction <add>, %76, %cst_28 [2] : vector<1x16x16xf32> to vector<1x16xf32>
    %78 = vector.shape_cast %77 : vector<1x16xf32> to vector<1x16x1xf32>
    %79 = tpu.reciprocal %78 {approx = true} : vector<1x16x1xf32> -> vector<1x16x1xf32>
    %80 = vector.broadcast %79 : vector<1x16x1xf32> to vector<1x16x16xf32>
    %81 = arith.mulf %76, %80 : vector<1x16x16xf32>
    %82 = arith.truncf %81 : vector<1x16x16xf32> to vector<1x16x16xbf16>
    %83 = vector.extract_strided_slice %41 {offsets = [0, 0, 16], sizes = [1, 16, 16], strides = [1, 1, 1]} : vector<1x16x64xbf16> to vector<1x16x16xbf16>
    "tpu.trace_start"() <{level = 10 : i32, message = "bqk,bkd->bqd"}> : () -> ()
    %cst_29 = arith.constant dense<0.000000e+00> : vector<1x16x16xf32>
    %84 = tpu.matmul %82, %83, %cst_29 {dimension_numbers = #tpu.dot_dimension_numbers<[2], [1], [1], [2], [0, 0, 0, 1, 1, 2], [0], [0]>} : vector<1x16x16xbf16>, vector<1x16x16xbf16>, vector<1x16x16xf32> -> vector<1x16x16xf32>
    "tpu.trace_stop"() : () -> ()
    %85 = arith.truncf %84 : vector<1x16x16xf32> to vector<1x16x16xbf16>
    %c0_30 = arith.constant 0 : index
    %c0_31 = arith.constant 0 : index
    %c16 = arith.constant 16 : index
    %86 = vector.load %arg16[%c0_30, %c0_31, %c16] : memref<1x16x64xbf16, #tpu.memory_space<vmem>>, vector<1x16x16xbf16>
    tpu.vector_store %arg16[%c0_30, %c0_31, %c16], %85 {strides = array<i32>} : memref<1x16x64xbf16, #tpu.memory_space<vmem>>, vector<1x16x16xbf16>,
    %87 = vector.extract_strided_slice %37 {offsets = [0, 0, 32], sizes = [1, 16, 16], strides = [1, 1, 1]} : vector<1x16x64xbf16> to vector<1x16x16xbf16>
    %88 = vector.extract_strided_slice %39 {offsets = [0, 0, 32], sizes = [1, 16, 16], strides = [1, 1, 1]} : vector<1x16x64xbf16> to vector<1x16x16xbf16>
    "tpu.trace_start"() <{level = 10 : i32, message = "bqd,bkd->bqk"}> : () -> ()
    %cst_32 = arith.constant dense<0.000000e+00> : vector<1x16x16xf32>
    %89 = tpu.matmul %87, %88, %cst_32 {dimension_numbers = #tpu.dot_dimension_numbers<[2], [2], [1], [1], [0, 0, 0, 1, 1, 1], [0], [0]>} : vector<1x16x16xbf16>, vector<1x16x16xbf16>, vector<1x16x16xf32> -> vector<1x16x16xf32>
    "tpu.trace_stop"() : () -> ()
    %90 = arith.addf %89, %48 : vector<1x16x16xf32>
    %cst_33 = arith.constant dense<0xFF800000> : vector<1x16xf32>
    %91 = vector.multi_reduction <maximumf>, %90, %cst_33 [2] : vector<1x16x16xf32> to vector<1x16xf32>
    %92 = vector.shape_cast %91 : vector<1x16xf32> to vector<1x16x1xf32>
    %93 = vector.broadcast %92 : vector<1x16x1xf32> to vector<1x16x16xf32>
    %94 = arith.subf %90, %93 : vector<1x16x16xf32>
    %95 = math.exp %94 : vector<1x16x16xf32>
    %cst_34 = arith.constant dense<0.000000e+00> : vector<1x16xf32>
    %96 = vector.multi_reduction <add>, %95, %cst_34 [2] : vector<1x16x16xf32> to vector<1x16xf32>
    %97 = vector.shape_cast %96 : vector<1x16xf32> to vector<1x16x1xf32>
    %98 = tpu.reciprocal %97 {approx = true} : vector<1x16x1xf32> -> vector<1x16x1xf32>
    %99 = vector.broadcast %98 : vector<1x16x1xf32> to vector<1x16x16xf32>
    %100 = arith.mulf %95, %99 : vector<1x16x16xf32>
    %101 = arith.truncf %100 : vector<1x16x16xf32> to vector<1x16x16xbf16>
    %102 = vector.extract_strided_slice %41 {offsets = [0, 0, 32], sizes = [1, 16, 16], strides = [1, 1, 1]} : vector<1x16x64xbf16> to vector<1x16x16xbf16>
    "tpu.trace_start"() <{level = 10 : i32, message = "bqk,bkd->bqd"}> : () -> ()
    %cst_35 = arith.constant dense<0.000000e+00> : vector<1x16x16xf32>
    %103 = tpu.matmul %101, %102, %cst_35 {dimension_numbers = #tpu.dot_dimension_numbers<[2], [1], [1], [2], [0, 0, 0, 1, 1, 2], [0], [0]>} : vector<1x16x16xbf16>, vector<1x16x16xbf16>, vector<1x16x16xf32> -> vector<1x16x16xf32>
    "tpu.trace_stop"() : () -> ()
    %104 = arith.truncf %103 : vector<1x16x16xf32> to vector<1x16x16xbf16>
    %c0_36 = arith.constant 0 : index
    %c0_37 = arith.constant 0 : index
    %c32 = arith.constant 32 : index
    %105 = vector.load %arg16[%c0_36, %c0_37, %c32] : memref<1x16x64xbf16, #tpu.memory_space<vmem>>, vector<1x16x16xbf16>
    tpu.vector_store %arg16[%c0_36, %c0_37, %c32], %104 {strides = array<i32>} : memref<1x16x64xbf16, #tpu.memory_space<vmem>>, vector<1x16x16xbf16>,
    %106 = vector.extract_strided_slice %37 {offsets = [0, 0, 48], sizes = [1, 16, 16], strides = [1, 1, 1]} : vector<1x16x64xbf16> to vector<1x16x16xbf16>
    %107 = vector.extract_strided_slice %39 {offsets = [0, 0, 48], sizes = [1, 16, 16], strides = [1, 1, 1]} : vector<1x16x64xbf16> to vector<1x16x16xbf16>
    "tpu.trace_start"() <{level = 10 : i32, message = "bqd,bkd->bqk"}> : () -> ()
    %cst_38 = arith.constant dense<0.000000e+00> : vector<1x16x16xf32>
    %108 = tpu.matmul %106, %107, %cst_38 {dimension_numbers = #tpu.dot_dimension_numbers<[2], [2], [1], [1], [0, 0, 0, 1, 1, 1], [0], [0]>} : vector<1x16x16xbf16>, vector<1x16x16xbf16>, vector<1x16x16xf32> -> vector<1x16x16xf32>
    "tpu.trace_stop"() : () -> ()
    %109 = arith.addf %108, %48 : vector<1x16x16xf32>
    %cst_39 = arith.constant dense<0xFF800000> : vector<1x16xf32>
    %110 = vector.multi_reduction <maximumf>, %109, %cst_39 [2] : vector<1x16x16xf32> to vector<1x16xf32>
    %111 = vector.shape_cast %110 : vector<1x16xf32> to vector<1x16x1xf32>
    %112 = vector.broadcast %111 : vector<1x16x1xf32> to vector<1x16x16xf32>
    %113 = arith.subf %109, %112 : vector<1x16x16xf32>
    %114 = math.exp %113 : vector<1x16x16xf32>
    %cst_40 = arith.constant dense<0.000000e+00> : vector<1x16xf32>
    %115 = vector.multi_reduction <add>, %114, %cst_40 [2] : vector<1x16x16xf32> to vector<1x16xf32>
    %116 = vector.shape_cast %115 : vector<1x16xf32> to vector<1x16x1xf32>
    %117 = tpu.reciprocal %116 {approx = true} : vector<1x16x1xf32> -> vector<1x16x1xf32>
    %118 = vector.broadcast %117 : vector<1x16x1xf32> to vector<1x16x16xf32>
    %119 = arith.mulf %114, %118 : vector<1x16x16xf32>
    %120 = arith.truncf %119 : vector<1x16x16xf32> to vector<1x16x16xbf16>
    %121 = vector.extract_strided_slice %41 {offsets = [0, 0, 48], sizes = [1, 16, 16], strides = [1, 1, 1]} : vector<1x16x64xbf16> to vector<1x16x16xbf16>
    "tpu.trace_start"() <{level = 10 : i32, message = "bqk,bkd->bqd"}> : () -> ()
    %cst_41 = arith.constant dense<0.000000e+00> : vector<1x16x16xf32>
    %122 = tpu.matmul %120, %121, %cst_41 {dimension_numbers = #tpu.dot_dimension_numbers<[2], [1], [1], [2], [0, 0, 0, 1, 1, 2], [0], [0]>} : vector<1x16x16xbf16>, vector<1x16x16xbf16>, vector<1x16x16xf32> -> vector<1x16x16xf32>
    "tpu.trace_stop"() : () -> ()
    %123 = arith.truncf %122 : vector<1x16x16xf32> to vector<1x16x16xbf16>
    %c0_42 = arith.constant 0 : index
    %c0_43 = arith.constant 0 : index
    %c48 = arith.constant 48 : index
    %124 = vector.load %arg16[%c0_42, %c0_43, %c48] : memref<1x16x64xbf16, #tpu.memory_space<vmem>>, vector<1x16x16xbf16>
    tpu.vector_store %arg16[%c0_42, %c0_43, %c48], %123 {strides = array<i32>} : memref<1x16x64xbf16, #tpu.memory_space<vmem>>, vector<1x16x16xbf16>,
    %c0_44 = arith.constant 0 : index
    %c0_45 = arith.constant 0 : index
    %c0_46 = arith.constant 0 : index
    %125 = vector.load %arg16[%c0_44, %c0_45, %c0_46] : memref<1x16x64xbf16, #tpu.memory_space<vmem>>, vector<1x16x64xbf16>
    %126 = vector.shape_cast %125 : vector<1x16x64xbf16> to vector<16x64xbf16>
    %c0_47 = arith.constant 0 : index
    %c0_48 = arith.constant 0 : index
    %c0_49 = arith.constant 0 : index
    %127 = vector.load %arg6[%c0_47, %c0_48, %c0_49] : memref<1x64x64xbf16, #tpu.memory_space<vmem>>, vector<1x64x64xbf16>
    %128 = vector.shape_cast %127 : vector<1x64x64xbf16> to vector<64x64xbf16>
    %cst_50 = arith.constant dense<0.000000e+00> : vector<16x64xf32>
    %129 = tpu.matmul %126, %128, %cst_50 {dimension_numbers = #tpu.dot_dimension_numbers<[1], [0], [0], [1], [0, 0, 1, 1], [], []>} : vector<16x64xbf16>, vector<64x64xbf16>, vector<16x64xf32> -> vector<16x64xf32>
    %c0_51 = arith.constant 0 : index
    %c0_52 = arith.constant 0 : index
    %c0_53 = arith.constant 0 : index
    %130 = vector.load %arg7[%c0_51, %c0_52, %c0_53] : memref<1x1x64xf32, #tpu.memory_space<vmem>>, vector<1x1x64xf32>
    %131 = vector.shape_cast %130 : vector<1x1x64xf32> to vector<1x64xf32>
    %132 = vector.broadcast %131 : vector<1x64xf32> to vector<16x64xf32>
    %133 = arith.addf %129, %132 : vector<16x64xf32>
    %134 = arith.addf %4, %133 : vector<16x64xf32>
    %c0_54 = arith.constant 0 : index
    %c0_55 = arith.constant 0 : index
    %c0_56 = arith.constant 0 : index
    %135 = vector.load %arg8[%c0_54, %c0_55, %c0_56] : memref<1x1x64xf32, #tpu.memory_space<vmem>>, vector<1x1x64xf32>
    %136 = vector.shape_cast %135 : vector<1x1x64xf32> to vector<1x64xf32>
    %c0_57 = arith.constant 0 : index
    %c0_58 = arith.constant 0 : index
    %c0_59 = arith.constant 0 : index
    %137 = vector.load %arg9[%c0_57, %c0_58, %c0_59] : memref<1x1x64xf32, #tpu.memory_space<vmem>>, vector<1x1x64xf32>
    %138 = vector.shape_cast %137 : vector<1x1x64xf32> to vector<1x64xf32>
    %cst_60 = arith.constant dense<0.000000e+00> : vector<16xf32>
    %139 = vector.multi_reduction <add>, %134, %cst_60 [1] : vector<16x64xf32> to vector<16xf32>
    %140 = vector.shape_cast %139 : vector<16xf32> to vector<16x1xf32>
    %cst_61 = arith.constant 6.400000e+01 : f32
    %141 = vector.broadcast %cst_61 : f32 to vector<16x1xf32>
    %142 = arith.divf %140, %141 : vector<16x1xf32>
    %143 = vector.broadcast %142 : vector<16x1xf32> to vector<16x64xf32>
    %144 = arith.subf %134, %143 : vector<16x64xf32>
    %145 = arith.mulf %144, %144 : vector<16x64xf32>
    %cst_62 = arith.constant dense<0.000000e+00> : vector<16xf32>
    %146 = vector.multi_reduction <add>, %145, %cst_62 [1] : vector<16x64xf32> to vector<16xf32>
    %147 = vector.shape_cast %146 : vector<16xf32> to vector<16x1xf32>
    %cst_63 = arith.constant 6.400000e+01 : f32
    %148 = vector.broadcast %cst_63 : f32 to vector<16x1xf32>
    %149 = arith.divf %147, %148 : vector<16x1xf32>
    %150 = vector.broadcast %142 : vector<16x1xf32> to vector<16x64xf32>
    %151 = arith.subf %134, %150 : vector<16x64xf32>
    %cst_64 = arith.constant 9.99999974E-6 : f32
    %152 = vector.broadcast %cst_64 : f32 to vector<16x1xf32>
    %153 = arith.addf %149, %152 : vector<16x1xf32>
    %154 = math.rsqrt %153 : vector<16x1xf32>
    %155 = vector.broadcast %154 : vector<16x1xf32> to vector<16x64xf32>
    %156 = arith.mulf %151, %155 : vector<16x64xf32>
    %157 = vector.broadcast %136 : vector<1x64xf32> to vector<16x64xf32>
    %158 = arith.mulf %156, %157 : vector<16x64xf32>
    %159 = vector.broadcast %138 : vector<1x64xf32> to vector<16x64xf32>
    %160 = arith.addf %158, %159 : vector<16x64xf32>
    %161 = arith.truncf %160 : vector<16x64xf32> to vector<16x64xbf16>
    %cst_65 = arith.constant 0.000000e+00 : f32
    %162 = vector.broadcast %cst_65 : f32 to vector<16x64xf32>
    %c0_66 = arith.constant 0 : index
    %c0_67 = arith.constant 0 : index
    %c0_68 = arith.constant 0 : index
    %163 = vector.load %arg10[%c0_66, %c0_67, %c0_68] : memref<1x64x256xbf16, #tpu.memory_space<vmem>>, vector<1x64x128xbf16>
    %164 = vector.shape_cast %163 : vector<1x64x128xbf16> to vector<64x128xbf16>
    %cst_69 = arith.constant dense<0.000000e+00> : vector<16x128xf32>
    %165 = tpu.matmul %161, %164, %cst_69 {dimension_numbers = #tpu.dot_dimension_numbers<[1], [0], [0], [1], [0, 0, 1, 1], [], []>} : vector<16x64xbf16>, vector<64x128xbf16>, vector<16x128xf32> -> vector<16x128xf32>
    %c0_70 = arith.constant 0 : index
    %c0_71 = arith.constant 0 : index
    %c0_72 = arith.constant 0 : index
    %166 = vector.load %arg11[%c0_70, %c0_71, %c0_72] : memref<1x1x256xf32, #tpu.memory_space<vmem>>, vector<1x1x128xf32>
    %167 = vector.shape_cast %166 : vector<1x1x128xf32> to vector<1x128xf32>
    %168 = vector.broadcast %167 : vector<1x128xf32> to vector<16x128xf32>
    %169 = arith.addf %165, %168 : vector<16x128xf32>
    %cst_73 = arith.constant 1.702000e+00 : f32
    %170 = vector.broadcast %cst_73 : f32 to vector<16x128xf32>
    %171 = arith.mulf %170, %169 : vector<16x128xf32>
    %172 = arith.negf %171 : vector<16x128xf32>
    %173 = math.exp %172 : vector<16x128xf32>
    %cst_74 = arith.constant 1.000000e+00 : f32
    %174 = vector.broadcast %cst_74 : f32 to vector<16x128xf32>
    %175 = arith.addf %174, %173 : vector<16x128xf32>
    %176 = arith.divf %174, %175 : vector<16x128xf32>
    %177 = arith.mulf %169, %176 : vector<16x128xf32>
    %178 = arith.truncf %177 : vector<16x128xf32> to vector<16x128xbf16>
    %c0_75 = arith.constant 0 : index
    %c0_76 = arith.constant 0 : index
    %c0_77 = arith.constant 0 : index
    %179 = vector.load %arg12[%c0_75, %c0_76, %c0_77] : memref<1x256x64xbf16, #tpu.memory_space<vmem>>, vector<1x128x64xbf16>
    %180 = vector.shape_cast %179 : vector<1x128x64xbf16> to vector<128x64xbf16>
    %cst_78 = arith.constant dense<0.000000e+00> : vector<16x64xf32>
    %181 = tpu.matmul %178, %180, %cst_78 {dimension_numbers = #tpu.dot_dimension_numbers<[1], [0], [0], [1], [0, 0, 1, 1], [], []>} : vector<16x128xbf16>, vector<128x64xbf16>, vector<16x64xf32> -> vector<16x64xf32>
    %182 = arith.addf %162, %181 : vector<16x64xf32>
    %c0_79 = arith.constant 0 : index
    %c0_80 = arith.constant 0 : index
    %c128 = arith.constant 128 : index
    %183 = vector.load %arg10[%c0_79, %c0_80, %c128] : memref<1x64x256xbf16, #tpu.memory_space<vmem>>, vector<1x64x128xbf16>
    %184 = vector.shape_cast %183 : vector<1x64x128xbf16> to vector<64x128xbf16>
    %cst_81 = arith.constant dense<0.000000e+00> : vector<16x128xf32>
    %185 = tpu.matmul %161, %184, %cst_81 {dimension_numbers = #tpu.dot_dimension_numbers<[1], [0], [0], [1], [0, 0, 1, 1], [], []>} : vector<16x64xbf16>, vector<64x128xbf16>, vector<16x128xf32> -> vector<16x128xf32>
    %c0_82 = arith.constant 0 : index
    %c0_83 = arith.constant 0 : index
    %c128_84 = arith.constant 128 : index
    %186 = vector.load %arg11[%c0_82, %c0_83, %c128_84] : memref<1x1x256xf32, #tpu.memory_space<vmem>>, vector<1x1x128xf32>
    %187 = vector.shape_cast %186 : vector<1x1x128xf32> to vector<1x128xf32>
    %188 = vector.broadcast %187 : vector<1x128xf32> to vector<16x128xf32>
    %189 = arith.addf %185, %188 : vector<16x128xf32>
    %cst_85 = arith.constant 1.702000e+00 : f32
    %190 = vector.broadcast %cst_85 : f32 to vector<16x128xf32>
    %191 = arith.mulf %190, %189 : vector<16x128xf32>
    %192 = arith.negf %191 : vector<16x128xf32>
    %193 = math.exp %192 : vector<16x128xf32>
    %cst_86 = arith.constant 1.000000e+00 : f32
    %194 = vector.broadcast %cst_86 : f32 to vector<16x128xf32>
    %195 = arith.addf %194, %193 : vector<16x128xf32>
    %196 = arith.divf %194, %195 : vector<16x128xf32>
    %197 = arith.mulf %189, %196 : vector<16x128xf32>
    %198 = arith.truncf %197 : vector<16x128xf32> to vector<16x128xbf16>
    %c0_87 = arith.constant 0 : index
    %c128_88 = arith.constant 128 : index
    %c0_89 = arith.constant 0 : index
    %199 = vector.load %arg12[%c0_87, %c128_88, %c0_89] : memref<1x256x64xbf16, #tpu.memory_space<vmem>>, vector<1x128x64xbf16>
    %200 = vector.shape_cast %199 : vector<1x128x64xbf16> to vector<128x64xbf16>
    %cst_90 = arith.constant dense<0.000000e+00> : vector<16x64xf32>
    %201 = tpu.matmul %198, %200, %cst_90 {dimension_numbers = #tpu.dot_dimension_numbers<[1], [0], [0], [1], [0, 0, 1, 1], [], []>} : vector<16x128xbf16>, vector<128x64xbf16>, vector<16x64xf32> -> vector<16x64xf32>
    %202 = arith.addf %182, %201 : vector<16x64xf32>
    %203 = arith.addf %134, %202 : vector<16x64xf32>
    %c0_91 = arith.constant 0 : index
    %c0_92 = arith.constant 0 : index
    %c0_93 = arith.constant 0 : index
    %204 = vector.load %arg13[%c0_91, %c0_92, %c0_93] : memref<1x1x64xf32, #tpu.memory_space<vmem>>, vector<1x1x64xf32>
    %205 = vector.shape_cast %204 : vector<1x1x64xf32> to vector<1x64xf32>
    %206 = vector.broadcast %205 : vector<1x64xf32> to vector<16x64xf32>
    %207 = arith.addf %203, %206 : vector<16x64xf32>
    %208 = vector.shape_cast %207 : vector<16x64xf32> to vector<1x16x64xf32>
    %c0_94 = arith.constant 0 : index
    %c0_95 = arith.constant 0 : index
    %c0_96 = arith.constant 0 : index
    %209 = vector.load %arg15[%c0_94, %c0_95, %c0_96] : memref<1x16x64xf32, #tpu.memory_space<vmem>>, vector<1x16x64xf32>
    tpu.vector_store %arg15[%c0_94, %c0_95, %c0_96], %208 {strides = array<i32>} : memref<1x16x64xf32, #tpu.memory_space<vmem>>, vector<1x16x64xf32>,
    %c1_i32 = arith.constant 1 : i32
    %210 = arith.cmpi eq, %arg1, %c1_i32 : i32
    %211 = arith.extui %210 : i1 to i32
    %c0_i32_97 = arith.constant 0 : i32
    %212 = arith.cmpi ne, %211, %c0_i32_97 : i32
    scf.if %212 {
      %213 = vector.shape_cast %207 : vector<16x64xf32> to vector<1x16x64xf32>
      %c0_98 = arith.constant 0 : index
      %c0_99 = arith.constant 0 : index
      %c0_100 = arith.constant 0 : index
      %214 = vector.load %arg14[%c0_98, %c0_99, %c0_100] : memref<1x16x64xf32, #tpu.memory_space<vmem>>, vector<1x16x64xf32>
      tpu.vector_store %arg14[%c0_98, %c0_99, %c0_100], %213 {strides = array<i32>} : memref<1x16x64xf32, #tpu.memory_space<vmem>>, vector<1x16x64xf32>,
    } else {
    }
    return
  }
  func.func @transform_0(%arg0: i32, %arg1: i32) -> (i32, i32, i32) {
    %c0_i32 = arith.constant 0 : i32
    %c0_i32_0 = arith.constant 0 : i32
    %c0_i32_1 = arith.constant 0 : i32
    return %arg0, %c0_i32, %c0_i32_0 : i32, i32, i32
  }
  func.func @transform_1(%arg0: i32, %arg1: i32) -> (i32, i32, i32) {
    %c0_i32 = arith.constant 0 : i32
    %c0_i32_0 = arith.constant 0 : i32
    %c0_i32_1 = arith.constant 0 : i32
    return %arg1, %c0_i32, %c0_i32_0 : i32, i32, i32
  }
  func.func @transform_2(%arg0: i32, %arg1: i32) -> (i32, i32, i32) {
    %c0_i32 = arith.constant 0 : i32
    %c0_i32_0 = arith.constant 0 : i32
    %c0_i32_1 = arith.constant 0 : i32
    return %arg1, %c0_i32, %c0_i32_0 : i32, i32, i32
  }
  func.func @transform_3(%arg0: i32, %arg1: i32) -> (i32, i32, i32) {
    %c0_i32 = arith.constant 0 : i32
    %c0_i32_0 = arith.constant 0 : i32
    %c0_i32_1 = arith.constant 0 : i32
    return %arg1, %c0_i32, %c0_i32_0 : i32, i32, i32
  }
  func.func @transform_4(%arg0: i32, %arg1: i32) -> (i32, i32, i32) {
    %c0_i32 = arith.constant 0 : i32
    %c0_i32_0 = arith.constant 0 : i32
    %c0_i32_1 = arith.constant 0 : i32
    return %arg1, %c0_i32, %c0_i32_0 : i32, i32, i32
  }
  func.func @transform_5(%arg0: i32, %arg1: i32) -> (i32, i32, i32) {
    %c0_i32 = arith.constant 0 : i32
    %c0_i32_0 = arith.constant 0 : i32
    %c0_i32_1 = arith.constant 0 : i32
    return %arg1, %c0_i32, %c0_i32_0 : i32, i32, i32
  }
  func.func @transform_6(%arg0: i32, %arg1: i32) -> (i32, i32, i32) {
    %c0_i32 = arith.constant 0 : i32
    %c0_i32_0 = arith.constant 0 : i32
    %c0_i32_1 = arith.constant 0 : i32
    return %arg1, %c0_i32, %c0_i32_0 : i32, i32, i32
  }
  func.func @transform_7(%arg0: i32, %arg1: i32) -> (i32, i32, i32) {
    %c0_i32 = arith.constant 0 : i32
    %c0_i32_0 = arith.constant 0 : i32
    %c0_i32_1 = arith.constant 0 : i32
    return %arg1, %c0_i32, %c0_i32_0 : i32, i32, i32
  }
  func.func @transform_8(%arg0: i32, %arg1: i32) -> (i32, i32, i32) {
    %c0_i32 = arith.constant 0 : i32
    %c0_i32_0 = arith.constant 0 : i32
    %c0_i32_1 = arith.constant 0 : i32
    return %arg1, %c0_i32, %c0_i32_0 : i32, i32, i32
  }
  func.func @transform_9(%arg0: i32, %arg1: i32) -> (i32, i32, i32) {
    %c0_i32 = arith.constant 0 : i32
    %c0_i32_0 = arith.constant 0 : i32
    %c0_i32_1 = arith.constant 0 : i32
    return %arg1, %c0_i32, %c0_i32_0 : i32, i32, i32
  }
  func.func @transform_10(%arg0: i32, %arg1: i32) -> (i32, i32, i32) {
    %c0_i32 = arith.constant 0 : i32
    %c0_i32_0 = arith.constant 0 : i32
    %c0_i32_1 = arith.constant 0 : i32
    return %arg1, %c0_i32, %c0_i32_0 : i32, i32, i32
  }
  func.func @transform_11(%arg0: i32, %arg1: i32) -> (i32, i32, i32) {
    %c0_i32 = arith.constant 0 : i32
    %c0_i32_0 = arith.constant 0 : i32
    %c0_i32_1 = arith.constant 0 : i32
    return %arg1, %c0_i32, %c0_i32_0 : i32, i32, i32
  }
  func.func @transform_12(%arg0: i32, %arg1: i32) -> (i32, i32, i32) {
    %c0_i32 = arith.constant 0 : i32
    %c0_i32_0 = arith.constant 0 : i32
    %c0_i32_1 = arith.constant 0 : i32
    return %arg0, %c0_i32, %c0_i32_0 : i32, i32, i32
  }
}

</mosaic_0001>

<llo_original>
// kernel: clip_forward.1
$region0: #{clip_forward.1}
  #allocation0 [shape = 'u32[]', space=smem, size = 0x4, offset = 0x4, fixed_abs, tag = 'smem constant byte address 0x4 - core index']
  #allocation1 [shape = 'u32[72,128]{1,0:T(1,128)}', space=vmem, size = 0x9000, scoped, tag = 'internal scratch']
  #allocation2 [shape = 'f32[1,16,64]{2,1,0:T(8,128)}', space=vmem, size = 0x2000, scoped, tag = 'scratch operand']
  #allocation3 [shape = 'bf16[1,16,64]{2,1,0:T(8,128)(2,1)}', space=vmem, size = 0x1000, scoped, tag = 'scratch operand']
  %s0 = inlined_call_operand.vmem [shape: f32[2,16,64], index: 0, kind: input, shape index: {}]
  %s1 = inlined_call_operand.vmem [shape: f32[2,1,64], index: 1, kind: input, shape index: {}]
  %s2 = inlined_call_operand.vmem [shape: f32[2,1,64], index: 2, kind: input, shape index: {}]
  %s3 = inlined_call_operand.vmem [shape: bf16[2,64,192], index: 3, kind: input, shape index: {}]
  %s4 = inlined_call_operand.vmem [shape: bf16[2,64,64], index: 4, kind: input, shape index: {}]
  %s5 = inlined_call_operand.vmem [shape: f32[2,1,64], index: 5, kind: input, shape index: {}]
  %s6 = inlined_call_operand.vmem [shape: f32[2,1,64], index: 6, kind: input, shape index: {}]
  %s7 = inlined_call_operand.vmem [shape: f32[2,1,64], index: 7, kind: input, shape index: {}]
  %s8 = inlined_call_operand.vmem [shape: bf16[2,64,256], index: 8, kind: input, shape index: {}]
  %s9 = inlined_call_operand.vmem [shape: f32[2,1,256], index: 9, kind: input, shape index: {}]
  %s10 = inlined_call_operand.vmem [shape: bf16[2,256,64], index: 10, kind: input, shape index: {}]
  %s11 = inlined_call_operand.vmem [shape: f32[2,1,64], index: 11, kind: input, shape index: {}]
  %s12 = inlined_call_operand.vmem [shape: f32[2,16,64], index: 12, kind: output, shape index: {}]
  %s13 = sld [smem:[#allocation0]]
  $region89: #{clip_forward.1} parent=0
    _
  %s15 = ssub.s32 1, %s13
  %s16 = scalar_select 0, %s15, %s13
  loop: start=0, step=1, limit=6
  $region2: #{clip_forward.1} parent=0 // loop_pre_header
    _
  $region3: #{clip_forward.1} parent=0 // loop_header
    %s18 = sphi 0, %s22
    %p19 = scmp.ge.s32.totalorder %s18, 6
    %s25 = sphi 0, %s37
    %s26 = sphi 0, %s33
    %s27 = sphi 0, %s25
    %s28 = sphi 0, %s26
    %s29 = sphi 0, %s27
    %s30 = sphi 0, %s28
    %s40 = sphi 0, %s42
    %s43 = sphi 0, %s40
    %s44 = sphi 0, %s43
    %s60 = sphi 0, %s44
    %s66 = sphi 0, %s68
    %s69 = sphi 0, %s66
    %s70 = sphi 0, %s69
    %s86 = sphi 0, %s70
    %s92 = sphi 0, %s94
    %s95 = sphi 0, %s92
    %s96 = sphi 0, %s95
    %s112 = sphi 0, %s96
    %s118 = sphi 0, %s120
    %s121 = sphi 0, %s118
    %s122 = sphi 0, %s121
    %s138 = sphi 0, %s122
    %s144 = sphi 0, %s146
    %s147 = sphi 0, %s144
    %s148 = sphi 0, %s147
    %s164 = sphi 0, %s148
    %s170 = sphi 0, %s172
    %s173 = sphi 0, %s170
    %s174 = sphi 0, %s173
    %s190 = sphi 0, %s174
    %s196 = sphi 0, %s198
    %s199 = sphi 0, %s196
    %s200 = sphi 0, %s199
    %s216 = sphi 0, %s200
    %s222 = sphi 0, %s224
    %s225 = sphi 0, %s222
    %s226 = sphi 0, %s225
    %s242 = sphi 0, %s226
    %s248 = sphi 0, %s250
    %s251 = sphi 0, %s248
    %s252 = sphi 0, %s251
    %s268 = sphi 0, %s252
    %s274 = sphi 0, %s276
    %s277 = sphi 0, %s274
    %s278 = sphi 0, %s277
    %s294 = sphi 0, %s278
    %s300 = sphi 0, %s302
    %s303 = sphi 0, %s300
    %s304 = sphi 0, %s303
    %s320 = sphi 0, %s304
    %s326 = sphi 0, %s328
    %s329 = sphi 0, %s326
    %s330 = sphi 0, %s329
    %s346 = sphi 0, %s330
    %s352 = sphi 0, %s354
    %s355 = sphi 0, %s352
    %s356 = sphi 0, %s355
    %s372 = sphi 0, %s356
  $region4: #{clip_forward.1} parent=0 // loop_header_branch
    %21 = sbr.rel (%p19) target = $region8
  $region5: #{clip_forward.1} parent=0 // loop_body
    %s23 = ssub.s32 %s18, 1
    %s24 = ssub.s32 %s18, 2
    %s31 = sadd.s32 1, %s26
    %p32 = scmp.ge.s32.totalorder %s31, 2
    %s33 = scalar_select %p32, 0, %s31
    %s34 = sadd.s32 1, %s25
    %s35 = scalar_select %p32, %s34, %s25
    %p36 = scmp.ge.s32.totalorder %s35, 2
    %s37 = scalar_select %p36, 0, %s35
    %s38 = ssub.s32 %s25, %s37
    %p39 = scmp.eq.s32.totalorder %s38, 0
    %s41 = sadd.s32 %s40, 1
    %s42 = scalar_select %p39, %s40, %s41
    %p45 = pneg %p39
    %p46 = scmp.eq.s32.totalorder %s18, 3
    %p47 = por %p45, %p46
    %p48 = scmp.ne.s32.totalorder %s40, %s43
    %p49 = scmp.eq.s32.totalorder %s18, 0
    %p50 = por %p48, %p49
    %p51 = scmp.ne.s32.totalorder %s40, %s43
    %p52 = scmp.eq.s32.totalorder %s23, 3
    %p53 = por %p51, %p52
    %p54 = scmp.ne.s32.totalorder %s43, %s44
    %p55 = scmp.eq.s32.totalorder %s23, 0
    %p56 = por %p54, %p55
    %p57 = scmp.ne.s32.totalorder %s43, %s44
    %p58 = scmp.eq.s32.totalorder %s24, 3
    %p59 = por %p57, %p58
    %p61 = scmp.ne.s32.totalorder %s44, %s60
    %p62 = scmp.eq.s32.totalorder %s24, 0
    %p63 = por %p61, %p62
    %s64 = ssub.s32 %s26, %s33
    %p65 = scmp.eq.s32.totalorder %s64, 0
    %s67 = sadd.s32 %s66, 1
    %s68 = scalar_select %p65, %s66, %s67
    %p71 = pneg %p65
    %p72 = scmp.eq.s32.totalorder %s18, 3
    %p73 = por %p71, %p72
    %p74 = scmp.ne.s32.totalorder %s66, %s69
    %p75 = scmp.eq.s32.totalorder %s18, 0
    %p76 = por %p74, %p75
    %p77 = scmp.ne.s32.totalorder %s66, %s69
    %p78 = scmp.eq.s32.totalorder %s23, 3
    %p79 = por %p77, %p78
    %p80 = scmp.ne.s32.totalorder %s69, %s70
    %p81 = scmp.eq.s32.totalorder %s23, 0
    %p82 = por %p80, %p81
    %p83 = scmp.ne.s32.totalorder %s69, %s70
    %p84 = scmp.eq.s32.totalorder %s24, 3
    %p85 = por %p83, %p84
    %p87 = scmp.ne.s32.totalorder %s70, %s86
    %p88 = scmp.eq.s32.totalorder %s24, 0
    %p89 = por %p87, %p88
    %s90 = ssub.s32 %s26, %s33
    %p91 = scmp.eq.s32.totalorder %s90, 0
    %s93 = sadd.s32 %s92, 1
    %s94 = scalar_select %p91, %s92, %s93
    %p97 = pneg %p91
    %p98 = scmp.eq.s32.totalorder %s18, 3
    %p99 = por %p97, %p98
    %p100 = scmp.ne.s32.totalorder %s92, %s95
    %p101 = scmp.eq.s32.totalorder %s18, 0
    %p102 = por %p100, %p101
    %p103 = scmp.ne.s32.totalorder %s92, %s95
    %p104 = scmp.eq.s32.totalorder %s23, 3
    %p105 = por %p103, %p104
    %p106 = scmp.ne.s32.totalorder %s95, %s96
    %p107 = scmp.eq.s32.totalorder %s23, 0
    %p108 = por %p106, %p107
    %p109 = scmp.ne.s32.totalorder %s95, %s96
    %p110 = scmp.eq.s32.totalorder %s24, 3
    %p111 = por %p109, %p110
    %p113 = scmp.ne.s32.totalorder %s96, %s112
    %p114 = scmp.eq.s32.totalorder %s24, 0
    %p115 = por %p113, %p114
    %s116 = ssub.s32 %s26, %s33
    %p117 = scmp.eq.s32.totalorder %s116, 0
    %s119 = sadd.s32 %s118, 1
    %s120 = scalar_select %p117, %s118, %s119
    %p123 = pneg %p117
    %p124 = scmp.eq.s32.totalorder %s18, 3
    %p125 = por %p123, %p124
    %p126 = scmp.ne.s32.totalorder %s118, %s121
    %p127 = scmp.eq.s32.totalorder %s18, 0
    %p128 = por %p126, %p127
    %p129 = scmp.ne.s32.totalorder %s118, %s121
    %p130 = scmp.eq.s32.totalorder %s23, 3
    %p131 = por %p129, %p130
    %p132 = scmp.ne.s32.totalorder %s121, %s122
    %p133 = scmp.eq.s32.totalorder %s23, 0
    %p134 = por %p132, %p133
    %p135 = scmp.ne.s32.totalorder %s121, %s122
    %p136 = scmp.eq.s32.totalorder %s24, 3
    %p137 = por %p135, %p136
    %p139 = scmp.ne.s32.totalorder %s122, %s138
    %p140 = scmp.eq.s32.totalorder %s24, 0
    %p141 = por %p139, %p140
    %s142 = ssub.s32 %s26, %s33
    %p143 = scmp.eq.s32.totalorder %s142, 0
    %s145 = sadd.s32 %s144, 1
    %s146 = scalar_select %p143, %s144, %s145
    %p149 = pneg %p143
    %p150 = scmp.eq.s32.totalorder %s18, 3
    %p151 = por %p149, %p150
    %p152 = scmp.ne.s32.totalorder %s144, %s147
    %p153 = scmp.eq.s32.totalorder %s18, 0
    %p154 = por %p152, %p153
    %p155 = scmp.ne.s32.totalorder %s144, %s147
    %p156 = scmp.eq.s32.totalorder %s23, 3
    %p157 = por %p155, %p156
    %p158 = scmp.ne.s32.totalorder %s147, %s148
    %p159 = scmp.eq.s32.totalorder %s23, 0
    %p160 = por %p158, %p159
    %p161 = scmp.ne.s32.totalorder %s147, %s148
    %p162 = scmp.eq.s32.totalorder %s24, 3
    %p163 = por %p161, %p162
    %p165 = scmp.ne.s32.totalorder %s148, %s164
    %p166 = scmp.eq.s32.totalorder %s24, 0
    %p167 = por %p165, %p166
    %s168 = ssub.s32 %s26, %s33
    %p169 = scmp.eq.s32.totalorder %s168, 0
    %s171 = sadd.s32 %s170, 1
    %s172 = scalar_select %p169, %s170, %s171
    %p175 = pneg %p169
    %p176 = scmp.eq.s32.totalorder %s18, 3
    %p177 = por %p175, %p176
    %p178 = scmp.ne.s32.totalorder %s170, %s173
    %p179 = scmp.eq.s32.totalorder %s18, 0
    %p180 = por %p178, %p179
    %p181 = scmp.ne.s32.totalorder %s170, %s173
    %p182 = scmp.eq.s32.totalorder %s23, 3
    %p183 = por %p181, %p182
    %p184 = scmp.ne.s32.totalorder %s173, %s174
    %p185 = scmp.eq.s32.totalorder %s23, 0
    %p186 = por %p184, %p185
    %p187 = scmp.ne.s32.totalorder %s173, %s174
    %p188 = scmp.eq.s32.totalorder %s24, 3
    %p189 = por %p187, %p188
    %p191 = scmp.ne.s32.totalorder %s174, %s190
    %p192 = scmp.eq.s32.totalorder %s24, 0
    %p193 = por %p191, %p192
    %s194 = ssub.s32 %s26, %s33
    %p195 = scmp.eq.s32.totalorder %s194, 0
    %s197 = sadd.s32 %s196, 1
    %s198 = scalar_select %p195, %s196, %s197
    %p201 = pneg %p195
    %p202 = scmp.eq.s32.totalorder %s18, 3
    %p203 = por %p201, %p202
    %p204 = scmp.ne.s32.totalorder %s196, %s199
    %p205 = scmp.eq.s32.totalorder %s18, 0
    %p206 = por %p204, %p205
    %p207 = scmp.ne.s32.totalorder %s196, %s199
    %p208 = scmp.eq.s32.totalorder %s23, 3
    %p209 = por %p207, %p208
    %p210 = scmp.ne.s32.totalorder %s199, %s200
    %p211 = scmp.eq.s32.totalorder %s23, 0
    %p212 = por %p210, %p211
    %p213 = scmp.ne.s32.totalorder %s199, %s200
    %p214 = scmp.eq.s32.totalorder %s24, 3
    %p215 = por %p213, %p214
    %p217 = scmp.ne.s32.totalorder %s200, %s216
    %p218 = scmp.eq.s32.totalorder %s24, 0
    %p219 = por %p217, %p218
    %s220 = ssub.s32 %s26, %s33
    %p221 = scmp.eq.s32.totalorder %s220, 0
    %s223 = sadd.s32 %s222, 1
    %s224 = scalar_select %p221, %s222, %s223
    %p227 = pneg %p221
    %p228 = scmp.eq.s32.totalorder %s18, 3
    %p229 = por %p227, %p228
    %p230 = scmp.ne.s32.totalorder %s222, %s225
    %p231 = scmp.eq.s32.totalorder %s18, 0
    %p232 = por %p230, %p231
    %p233 = scmp.ne.s32.totalorder %s222, %s225
    %p234 = scmp.eq.s32.totalorder %s23, 3
    %p235 = por %p233, %p234
    %p236 = scmp.ne.s32.totalorder %s225, %s226
    %p237 = scmp.eq.s32.totalorder %s23, 0
    %p238 = por %p236, %p237
    %p239 = scmp.ne.s32.totalorder %s225, %s226
    %p240 = scmp.eq.s32.totalorder %s24, 3
    %p241 = por %p239, %p240
    %p243 = scmp.ne.s32.totalorder %s226, %s242
    %p244 = scmp.eq.s32.totalorder %s24, 0
    %p245 = por %p243, %p244
    %s246 = ssub.s32 %s26, %s33
    %p247 = scmp.eq.s32.totalorder %s246, 0
    %s249 = sadd.s32 %s248, 1
    %s250 = scalar_select %p247, %s248, %s249
    %p253 = pneg %p247
    %p254 = scmp.eq.s32.totalorder %s18, 3
    %p255 = por %p253, %p254
    %p256 = scmp.ne.s32.totalorder %s248, %s251
    %p257 = scmp.eq.s32.totalorder %s18, 0
    %p258 = por %p256, %p257
    %p259 = scmp.ne.s32.totalorder %s248, %s251
    %p260 = scmp.eq.s32.totalorder %s23, 3
    %p261 = por %p259, %p260
    %p262 = scmp.ne.s32.totalorder %s251, %s252
    %p263 = scmp.eq.s32.totalorder %s23, 0
    %p264 = por %p262, %p263
    %p265 = scmp.ne.s32.totalorder %s251, %s252
    %p266 = scmp.eq.s32.totalorder %s24, 3
    %p267 = por %p265, %p266
    %p269 = scmp.ne.s32.totalorder %s252, %s268
    %p270 = scmp.eq.s32.totalorder %s24, 0
    %p271 = por %p269, %p270
    %s272 = ssub.s32 %s26, %s33
    %p273 = scmp.eq.s32.totalorder %s272, 0
    %s275 = sadd.s32 %s274, 1
    %s276 = scalar_select %p273, %s274, %s275
    %p279 = pneg %p273
    %p280 = scmp.eq.s32.totalorder %s18, 3
    %p281 = por %p279, %p280
    %p282 = scmp.ne.s32.totalorder %s274, %s277
    %p283 = scmp.eq.s32.totalorder %s18, 0
    %p284 = por %p282, %p283
    %p285 = scmp.ne.s32.totalorder %s274, %s277
    %p286 = scmp.eq.s32.totalorder %s23, 3
    %p287 = por %p285, %p286
    %p288 = scmp.ne.s32.totalorder %s277, %s278
    %p289 = scmp.eq.s32.totalorder %s23, 0
    %p290 = por %p288, %p289
    %p291 = scmp.ne.s32.totalorder %s277, %s278
    %p292 = scmp.eq.s32.totalorder %s24, 3
    %p293 = por %p291, %p292
    %p295 = scmp.ne.s32.totalorder %s278, %s294
    %p296 = scmp.eq.s32.totalorder %s24, 0
    %p297 = por %p295, %p296
    %s298 = ssub.s32 %s26, %s33
    %p299 = scmp.eq.s32.totalorder %s298, 0
    %s301 = sadd.s32 %s300, 1
    %s302 = scalar_select %p299, %s300, %s301
    %p305 = pneg %p299
    %p306 = scmp.eq.s32.totalorder %s18, 3
    %p307 = por %p305, %p306
    %p308 = scmp.ne.s32.totalorder %s300, %s303
    %p309 = scmp.eq.s32.totalorder %s18, 0
    %p310 = por %p308, %p309
    %p311 = scmp.ne.s32.totalorder %s300, %s303
    %p312 = scmp.eq.s32.totalorder %s23, 3
    %p313 = por %p311, %p312
    %p314 = scmp.ne.s32.totalorder %s303, %s304
    %p315 = scmp.eq.s32.totalorder %s23, 0
    %p316 = por %p314, %p315
    %p317 = scmp.ne.s32.totalorder %s303, %s304
    %p318 = scmp.eq.s32.totalorder %s24, 3
    %p319 = por %p317, %p318
    %p321 = scmp.ne.s32.totalorder %s304, %s320
    %p322 = scmp.eq.s32.totalorder %s24, 0
    %p323 = por %p321, %p322
    %s324 = ssub.s32 %s26, %s33
    %p325 = scmp.eq.s32.totalorder %s324, 0
    %s327 = sadd.s32 %s326, 1
    %s328 = scalar_select %p325, %s326, %s327
    %p331 = pneg %p325
    %p332 = scmp.eq.s32.totalorder %s18, 3
    %p333 = por %p331, %p332
    %p334 = scmp.ne.s32.totalorder %s326, %s329
    %p335 = scmp.eq.s32.totalorder %s18, 0
    %p336 = por %p334, %p335
    %p337 = scmp.ne.s32.totalorder %s326, %s329
    %p338 = scmp.eq.s32.totalorder %s23, 3
    %p339 = por %p337, %p338
    %p340 = scmp.ne.s32.totalorder %s329, %s330
    %p341 = scmp.eq.s32.totalorder %s23, 0
    %p342 = por %p340, %p341
    %p343 = scmp.ne.s32.totalorder %s329, %s330
    %p344 = scmp.eq.s32.totalorder %s24, 3
    %p345 = por %p343, %p344
    %p347 = scmp.ne.s32.totalorder %s330, %s346
    %p348 = scmp.eq.s32.totalorder %s24, 0
    %p349 = por %p347, %p348
    %s350 = ssub.s32 %s25, %s37
    %p351 = scmp.eq.s32.totalorder %s350, 0
    %s353 = sadd.s32 %s352, 1
    %s354 = scalar_select %p351, %s352, %s353
    %p357 = pneg %p351
    %p358 = scmp.eq.s32.totalorder %s18, 3
    %p359 = por %p357, %p358
    %p360 = scmp.ne.s32.totalorder %s352, %s355
    %p361 = scmp.eq.s32.totalorder %s18, 0
    %p362 = por %p360, %p361
    %p363 = scmp.ne.s32.totalorder %s352, %s355
    %p364 = scmp.eq.s32.totalorder %s23, 3
    %p365 = por %p363, %p364
    %p366 = scmp.ne.s32.totalorder %s355, %s356
    %p367 = scmp.eq.s32.totalorder %s23, 0
    %p368 = por %p366, %p367
    %p369 = scmp.ne.s32.totalorder %s355, %s356
    %p370 = scmp.eq.s32.totalorder %s24, 3
    %p371 = por %p369, %p370
    %p373 = scmp.ne.s32.totalorder %s356, %s372
    %p374 = scmp.eq.s32.totalorder %s24, 0
    %p375 = por %p373, %p374
    %p376 = scmp.le.s32.totalorder 1, %s18
    %p377 = scmp.lt.s32.totalorder %s18, 5
    %p378 = pnand %p376, %p377
    %p379 = pneg %p378
    // Predicated region
    $region9: #{clip_forward.1} parent=5 // pred_check
      _
    $region10: #{clip_forward.1} parent=5 // pred_check_branch
      %381 = sbr.rel (%p378) target = $region12
    $region11: #{clip_forward.1} parent=5 // pred_region
      %s382 = ssub.s32 %s18, 1
    $region12: #{clip_forward.1} parent=5 // pred_fallthru
      _
    %p383 = scmp.lt.s32.totalorder %s18, 4
    // Predicated region
    $region13: #{clip_forward.1} parent=5 // pred_check
      %p384 = pneg %p383
    $region14: #{clip_forward.1} parent=5 // pred_check_branch
      %386 = sbr.rel (%p384) target = $region16
    $region15: #{clip_forward.1} parent=5 // pred_region
      // Predicated region
      $region17: #{clip_forward.1} parent=15 // pred_check
        %p387 = pneg %p50
      $region18: #{clip_forward.1} parent=15 // pred_check_branch
        %389 = sbr.rel (%p387) target = $region20
      $region19: #{clip_forward.1} parent=15 // pred_region
        %p390 = scmp.lt.s32.totalorder %s25, 1
        %s391 = scalar_select %p390, %s25, 1
        %s392 = smul.addr %s391, 2
        %s393 = smul.addr %s392, 8
        %s394 = scalar_lea.vmem %s0, %s393
      $region20: #{clip_forward.1} parent=15 // pred_fallthru
        _
      // Predicated region
      $region21: #{clip_forward.1} parent=15 // pred_check
        %p395 = pneg %p76
      $region22: #{clip_forward.1} parent=15 // pred_check_branch
        %397 = sbr.rel (%p395) target = $region24
      $region23: #{clip_forward.1} parent=15 // pred_region
        %p398 = scmp.lt.s32.totalorder %s26, 1
        %s399 = scalar_select %p398, %s26, 1
        %s400 = scalar_lea.vmem %s1, %s399
      $region24: #{clip_forward.1} parent=15 // pred_fallthru
        _
      // Predicated region
      $region25: #{clip_forward.1} parent=15 // pred_check
        %p401 = pneg %p102
      $region26: #{clip_forward.1} parent=15 // pred_check_branch
        %403 = sbr.rel (%p401) target = $region28
      $region27: #{clip_forward.1} parent=15 // pred_region
        %p404 = scmp.lt.s32.totalorder %s26, 1
        %s405 = scalar_select %p404, %s26, 1
        %s406 = scalar_lea.vmem %s2, %s405
      $region28: #{clip_forward.1} parent=15 // pred_fallthru
        _
      // Predicated region
      $region29: #{clip_forward.1} parent=15 // pred_check
        %p407 = pneg %p128
      $region30: #{clip_forward.1} parent=15 // pred_check_branch
        %409 = sbr.rel (%p407) target = $region32
      $region31: #{clip_forward.1} parent=15 // pred_region
        %p410 = scmp.lt.s32.totalorder %s26, 1
        %s411 = scalar_select %p410, %s26, 1
        %s412 = smul.addr %s411, 16
        %s413 = smul.addr %s412, 4
        %s414 = scalar_lea.vmem %s3, %s413
      $region32: #{clip_forward.1} parent=15 // pred_fallthru
        _
      // Predicated region
      $region33: #{clip_forward.1} parent=15 // pred_check
        %p415 = pneg %p154
      $region34: #{clip_forward.1} parent=15 // pred_check_branch
        %417 = sbr.rel (%p415) target = $region36
      $region35: #{clip_forward.1} parent=15 // pred_region
        %p418 = scmp.lt.s32.totalorder %s26, 1
        %s419 = scalar_select %p418, %s26, 1
        %s420 = smul.addr %s419, 8
        %s421 = smul.addr %s420, 4
        %s422 = scalar_lea.vmem %s4, %s421
      $region36: #{clip_forward.1} parent=15 // pred_fallthru
        _
      // Predicated region
      $region37: #{clip_forward.1} parent=15 // pred_check
        %p423 = pneg %p180
      $region38: #{clip_forward.1} parent=15 // pred_check_branch
        %425 = sbr.rel (%p423) target = $region40
      $region39: #{clip_forward.1} parent=15 // pred_region
        %p426 = scmp.lt.s32.totalorder %s26, 1
        %s427 = scalar_select %p426, %s26, 1
        %s428 = scalar_lea.vmem %s5, %s427
      $region40: #{clip_forward.1} parent=15 // pred_fallthru
        _
      // Predicated region
      $region41: #{clip_forward.1} parent=15 // pred_check
        %p429 = pneg %p206
      $region42: #{clip_forward.1} parent=15 // pred_check_branch
        %431 = sbr.rel (%p429) target = $region44
      $region43: #{clip_forward.1} parent=15 // pred_region
        %p432 = scmp.lt.s32.totalorder %s26, 1
        %s433 = scalar_select %p432, %s26, 1
        %s434 = scalar_lea.vmem %s6, %s433
      $region44: #{clip_forward.1} parent=15 // pred_fallthru
        _
      // Predicated region
      $region45: #{clip_forward.1} parent=15 // pred_check
        %p435 = pneg %p232
      $region46: #{clip_forward.1} parent=15 // pred_check_branch
        %437 = sbr.rel (%p435) target = $region48
      $region47: #{clip_forward.1} parent=15 // pred_region
        %p438 = scmp.lt.s32.totalorder %s26, 1
        %s439 = scalar_select %p438, %s26, 1
        %s440 = scalar_lea.vmem %s7, %s439
      $region48: #{clip_forward.1} parent=15 // pred_fallthru
        _
      // Predicated region
      $region49: #{clip_forward.1} parent=15 // pred_check
        %p441 = pneg %p258
      $region50: #{clip_forward.1} parent=15 // pred_check_branch
        %443 = sbr.rel (%p441) target = $region52
      $region51: #{clip_forward.1} parent=15 // pred_region
        %p444 = scmp.lt.s32.totalorder %s26, 1
        %s445 = scalar_select %p444, %s26, 1
        %s446 = smul.addr %s445, 16
        %s447 = smul.addr %s446, 4
        %s448 = scalar_lea.vmem %s8, %s447
      $region52: #{clip_forward.1} parent=15 // pred_fallthru
        _
      // Predicated region
      $region53: #{clip_forward.1} parent=15 // pred_check
        %p449 = pneg %p284
      $region54: #{clip_forward.1} parent=15 // pred_check_branch
        %451 = sbr.rel (%p449) target = $region56
      $region55: #{clip_forward.1} parent=15 // pred_region
        %p452 = scmp.lt.s32.totalorder %s26, 1
        %s453 = scalar_select %p452, %s26, 1
        %s454 = smul.addr %s453, 2
        %s455 = scalar_lea.vmem %s9, %s454
      $region56: #{clip_forward.1} parent=15 // pred_fallthru
        _
      // Predicated region
      $region57: #{clip_forward.1} parent=15 // pred_check
        %p456 = pneg %p310
      $region58: #{clip_forward.1} parent=15 // pred_check_branch
        %458 = sbr.rel (%p456) target = $region60
      $region59: #{clip_forward.1} parent=15 // pred_region
        %p459 = scmp.lt.s32.totalorder %s26, 1
        %s460 = scalar_select %p459, %s26, 1
        %s461 = smul.addr %s460, 32
        %s462 = smul.addr %s461, 4
        %s463 = scalar_lea.vmem %s10, %s462
      $region60: #{clip_forward.1} parent=15 // pred_fallthru
        _
      // Predicated region
      $region61: #{clip_forward.1} parent=15 // pred_check
        %p464 = pneg %p336
      $region62: #{clip_forward.1} parent=15 // pred_check_branch
        %466 = sbr.rel (%p464) target = $region64
      $region63: #{clip_forward.1} parent=15 // pred_region
        %p467 = scmp.lt.s32.totalorder %s26, 1
        %s468 = scalar_select %p467, %s26, 1
        %s469 = scalar_lea.vmem %s11, %s468
      $region64: #{clip_forward.1} parent=15 // pred_fallthru
        _
    $region16: #{clip_forward.1} parent=5 // pred_fallthru
      _
    %p470 = scmp.le.s32.totalorder 1, %s18
    %p471 = scmp.lt.s32.totalorder %s18, 5
    %p472 = pnand %p470, %p471
    %p473 = pneg %p472
    // Predicated region
    $region65: #{clip_forward.1} parent=5 // pred_check
      _
    $region66: #{clip_forward.1} parent=5 // pred_check_branch
      %475 = sbr.rel (%p472) target = $region68
    $region67: #{clip_forward.1} parent=5 // pred_region
      %s476 = ssub.s32 %s18, 1
      %p477 = scmp.lt.s32.totalorder %s27, 1
      %s478 = scalar_select %p477, %s27, 1
      %s479 = smul.addr %s478, 2
      %s480 = smul.addr %s479, 8
      %s481 = scalar_lea.vmem %s0, %s480
      %p482 = pneg %p56
      %p483 = pneg %p53
      %p484 = scmp.lt.s32.totalorder %s28, 1
      %s485 = scalar_select %p484, %s28, 1
      %s486 = scalar_lea.vmem %s1, %s485
      %p487 = pneg %p82
      %p488 = pneg %p79
      %p489 = scmp.lt.s32.totalorder %s28, 1
      %s490 = scalar_select %p489, %s28, 1
      %s491 = scalar_lea.vmem %s2, %s490
      %p492 = pneg %p108
      %p493 = pneg %p105
      %p494 = scmp.lt.s32.totalorder %s28, 1
      %s495 = scalar_select %p494, %s28, 1
      %s496 = smul.addr %s495, 16
      %s497 = smul.addr %s496, 4
      %s498 = scalar_lea.vmem %s3, %s497
      %p499 = pneg %p134
      %p500 = pneg %p131
      %p501 = scmp.lt.s32.totalorder %s28, 1
      %s502 = scalar_select %p501, %s28, 1
      %s503 = smul.addr %s502, 8
      %s504 = smul.addr %s503, 4
      %s505 = scalar_lea.vmem %s4, %s504
      %p506 = pneg %p160
      %p507 = pneg %p157
      %p508 = scmp.lt.s32.totalorder %s28, 1
      %s509 = scalar_select %p508, %s28, 1
      %s510 = scalar_lea.vmem %s5, %s509
      %p511 = pneg %p186
      %p512 = pneg %p183
      %p513 = scmp.lt.s32.totalorder %s28, 1
      %s514 = scalar_select %p513, %s28, 1
      %s515 = scalar_lea.vmem %s6, %s514
      %p516 = pneg %p212
      %p517 = pneg %p209
      %p518 = scmp.lt.s32.totalorder %s28, 1
      %s519 = scalar_select %p518, %s28, 1
      %s520 = scalar_lea.vmem %s7, %s519
      %p521 = pneg %p238
      %p522 = pneg %p235
      %p523 = scmp.lt.s32.totalorder %s28, 1
      %s524 = scalar_select %p523, %s28, 1
      %s525 = smul.addr %s524, 16
      %s526 = smul.addr %s525, 4
      %s527 = scalar_lea.vmem %s8, %s526
      %p528 = pneg %p264
      %p529 = pneg %p261
      %p530 = scmp.lt.s32.totalorder %s28, 1
      %s531 = scalar_select %p530, %s28, 1
      %s532 = smul.addr %s531, 2
      %s533 = scalar_lea.vmem %s9, %s532
      %p534 = pneg %p290
      %p535 = pneg %p287
      %p536 = scmp.lt.s32.totalorder %s28, 1
      %s537 = scalar_select %p536, %s28, 1
      %s538 = smul.addr %s537, 32
      %s539 = smul.addr %s538, 4
      %s540 = scalar_lea.vmem %s10, %s539
      %p541 = pneg %p316
      %p542 = pneg %p313
      %p543 = scmp.lt.s32.totalorder %s28, 1
      %s544 = scalar_select %p543, %s28, 1
      %s545 = scalar_lea.vmem %s11, %s544
      %p546 = pneg %p342
      %p547 = pneg %p339
      %p548 = pneg %p368
      %p549 = pneg %p365
      %p550 = scmp.lt.s32.totalorder %s27, 1
      %s551 = scalar_select %p550, %s27, 1
      %s552 = smul.addr %s551, 2
      %s553 = smul.addr %s552, 8
      %s554 = scalar_lea.vmem %s12, %s553
      %p555 = scmp.lt.s32.totalorder %s27, 1
      %s556 = scalar_select %p555, %s27, 1
      %s557 = smul.addr %s556, 2
      %s558 = smul.addr %s557, 8
      %s559 = scalar_lea.vmem %s0, %s558
      %p560 = scmp.lt.s32.totalorder %s28, 1
      %s561 = scalar_select %p560, %s28, 1
      %s562 = scalar_lea.vmem %s1, %s561
      %p563 = scmp.lt.s32.totalorder %s28, 1
      %s564 = scalar_select %p563, %s28, 1
      %s565 = scalar_lea.vmem %s2, %s564
      %p566 = scmp.lt.s32.totalorder %s28, 1
      %s567 = scalar_select %p566, %s28, 1
      %s568 = smul.addr %s567, 16
      %s569 = smul.addr %s568, 4
      %s570 = scalar_lea.vmem %s3, %s569
      %p571 = scmp.lt.s32.totalorder %s28, 1
      %s572 = scalar_select %p571, %s28, 1
      %s573 = smul.addr %s572, 8
      %s574 = smul.addr %s573, 4
      %s575 = scalar_lea.vmem %s4, %s574
      %p576 = scmp.lt.s32.totalorder %s28, 1
      %s577 = scalar_select %p576, %s28, 1
      %s578 = scalar_lea.vmem %s5, %s577
      %p579 = scmp.lt.s32.totalorder %s28, 1
      %s580 = scalar_select %p579, %s28, 1
      %s581 = scalar_lea.vmem %s6, %s580
      %p582 = scmp.lt.s32.totalorder %s28, 1
      %s583 = scalar_select %p582, %s28, 1
      %s584 = scalar_lea.vmem %s7, %s583
      %p585 = scmp.lt.s32.totalorder %s28, 1
      %s586 = scalar_select %p585, %s28, 1
      %s587 = smul.addr %s586, 16
      %s588 = smul.addr %s587, 4
      %s589 = scalar_lea.vmem %s8, %s588
      %p590 = scmp.lt.s32.totalorder %s28, 1
      %s591 = scalar_select %p590, %s28, 1
      %s592 = smul.addr %s591, 2
      %s593 = scalar_lea.vmem %s9, %s592
      %p594 = scmp.lt.s32.totalorder %s28, 1
      %s595 = scalar_select %p594, %s28, 1
      %s596 = smul.addr %s595, 32
      %s597 = smul.addr %s596, 4
      %s598 = scalar_lea.vmem %s10, %s597
      %p599 = scmp.lt.s32.totalorder %s28, 1
      %s600 = scalar_select %p599, %s28, 1
      %s601 = scalar_lea.vmem %s11, %s600
      %p602 = scmp.lt.s32.totalorder %s27, 1
      %s603 = scalar_select %p602, %s27, 1
      %s604 = smul.addr %s603, 2
      %s605 = smul.addr %s604, 8
      %s606 = scalar_lea.vmem %s12, %s605
      %p608 = scmp.eq.s32.totalorder %s28, 0
      // Predicated region
      $region69: #{clip_forward.1} parent=67 // pred_check
        %p609 = pneg %p608
      $region70: #{clip_forward.1} parent=67 // pred_check_branch
        %611 = sbr.rel (%p609) target = $region72
      $region71: #{clip_forward.1} parent=67 // pred_region
        %v612 = vld [vmem:[%s559] sm:$0xff]
        %v613 = vld [vmem:[%s559 + $0x8] sm:$0xff]
        %vm614 = vcmask 523264
        %615 = vst.msk [vmem:[#allocation2] sm:$0xff] %vm614, %v612
        %616 = vst.msk [vmem:[#allocation2 + $0x8] sm:$0xff] %vm614, %v613
      $region72: #{clip_forward.1} parent=67 // pred_fallthru
        _
      %v617 = vld [vmem:[#allocation2] sm:$0xff]
      %v618 = vld [vmem:[#allocation2 + $0x8] sm:$0xff]
      %v619 = vld [vmem:[%s562] sm:$0x1]
      %v620 = vld [vmem:[%s565] sm:$0x1]
      %vm621 = vcmask 523264
      %v622 = vsel %vm621, %v617, 0.0
      %623 = vadd.xlane.f32.xlu0 %v622
      %v624 = vpop.xlane.xlu0 %623
      %v625 = vsel %vm621, %v618, 0.0
      %626 = vadd.xlane.f32.xlu0 %v625
      %v627 = vpop.xlane.xlu0 %626
      %v628 = vrcp.pop 64.0
      %v629 = vmul.f32 64.0, %v628
      %v630 = vsub.f32 1.0, %v629
      %v631 = vmul.f32 %v628, %v630
      %v632 = vadd.f32 %v628, %v631
      %vm633 = vweird.f32 %v628
      %v634 = vsel %vm633, %v628, %v632
      %v635 = vmul.f32 %v624, %v634
      %v636 = vmul.f32 %v627, %v634
      %v637 = vsub.f32 %v617, %v635
      %v638 = vsub.f32 %v618, %v636
      %v639 = vmul.f32 %v637, %v637
      %v640 = vmul.f32 %v638, %v638
      %v641 = vsel %vm621, %v639, 0.0
      %642 = vadd.xlane.f32.xlu0 %v641
      %v643 = vpop.xlane.xlu0 %642
      %v644 = vsel %vm621, %v640, 0.0
      %645 = vadd.xlane.f32.xlu0 %v644
      %v646 = vpop.xlane.xlu0 %645
      %v647 = vmul.f32 %v643, %v634
      %v648 = vmul.f32 %v646, %v634
      %v649 = vadd.f32 %v647, 1e-05
      %v650 = vadd.f32 %v648, 1e-05
      %v651 = vrsqrt.pop %v649
      %v652 = vmul.f32 %v651, %v649
      %v653 = vmul.f32 %v652, %v651
      %v654 = vmul.f32 0.5, %v653
      %v655 = vsub.f32 1.5, %v654
      %v656 = vmul.f32 %v651, %v655
      %vm657 = vweird.f32 %v649
      %vm658 = vweird.f32 %v651
      %vm659 = vmor %vm657, %vm658
      %v660 = vsel %vm659, %v651, %v656
      %v661 = vrsqrt.pop %v650
      %v662 = vmul.f32 %v661, %v650
      %v663 = vmul.f32 %v662, %v661
      %v664 = vmul.f32 0.5, %v663
      %v665 = vsub.f32 1.5, %v664
      %v666 = vmul.f32 %v661, %v665
      %vm667 = vweird.f32 %v650
      %vm668 = vweird.f32 %v661
      %vm669 = vmor %vm667, %vm668
      %v670 = vsel %vm669, %v661, %v666
      %v671 = vmul.f32 %v637, %v660
      %v672 = vmul.f32 %v638, %v670
      %v674 = vperm.slane %v619, 0
      %v676 = vmul.f32 %v671, %v674
      %v677 = vmul.f32 %v672, %v674
      %v679 = vperm.slane %v620, 0
      %v681 = vadd.f32 %v676, %v679
      %v682 = vadd.f32 %v677, %v679
      %v683 = vpack.c.bf16 %v682, %v681
      %v684 = vld [vmem:[%s570] sm:$0xff]
      %v685 = vld [vmem:[%s570 + $0x8] sm:$0xff]
      %v686 = vld [vmem:[%s570 + $0x10] sm:$0xff]
      %v687 = vld [vmem:[%s570 + $0x18] sm:$0xff]
      %v688 = vld [vmem:[%s570 + $0x20] sm:$0xff]
      %v689 = vld [vmem:[%s570 + $0x28] sm:$0xff]
      %v690 = vld [vmem:[%s570 + $0x30] sm:$0xff]
      %v691 = vld [vmem:[%s570 + $0x38] sm:$0xff]
      %v700 = vunpack.c.l.b16 %v684
      %v701 = vunpack.c.h.b16 %v684
      %v702 = vunpack.c.l.b16 %v685
      %v703 = vunpack.c.h.b16 %v685
      %v704 = vunpack.c.l.b16 %v686
      %v705 = vunpack.c.h.b16 %v686
      %v706 = vunpack.c.l.b16 %v687
      %v707 = vunpack.c.h.b16 %v687
      %v708 = vunpack.c.l.b16 %v688
      %v709 = vunpack.c.h.b16 %v688
      %v710 = vunpack.c.l.b16 %v689
      %v711 = vunpack.c.h.b16 %v689
      %v712 = vunpack.c.l.b16 %v690
      %v713 = vunpack.c.h.b16 %v690
      %v714 = vunpack.c.l.b16 %v691
      %v715 = vunpack.c.h.b16 %v691
      %v716 = vpack.c.b16 %v702, %v700
      %v717 = vpack.c.b16 %v703, %v701
      %v718 = vpack.c.b16 %v706, %v704
      %v719 = vpack.c.b16 %v707, %v705
      %v720 = vpack.c.b16 %v710, %v708
      %v721 = vpack.c.b16 %v711, %v709
      %v722 = vpack.c.b16 %v714, %v712
      %v723 = vpack.c.b16 %v715, %v713
      %v733 = vsel %vm621, %v683, 0
      %735 = vmatpush.bf16.msra.mxu0 0
      %736 = vmatpush.bf16.msra.mxu0 0
      %737 = vmatpush.bf16.msra.mxu0 0
      %738 = vmatpush.bf16.msra.mxu0 0
      %739 = vmatpush.bf16.msra.mxu0 %v722
      %740 = vmatpush.bf16.msra.mxu0 %v720
      %741 = vmatpush.bf16.msra.mxu0 %v718
      %742 = vmatpush.bf16.msra.mxu0 %v716
      %743 = vmatmul.bf16.gmra.mxu0 %v733
      %v744 = vpop.f32.mrf.mxu0
      %v745 = vadd.f32 0.0, %v744
      %v746 = vpop.f32.mrf.mxu0
      %v747 = vadd.f32 0.0, %v746
      %748 = vdwg.mxu0
      %749 = vmatpush.bf16.msra.mxu0 0
      %750 = vmatpush.bf16.msra.mxu0 0
      %751 = vmatpush.bf16.msra.mxu0 0
      %752 = vmatpush.bf16.msra.mxu0 0
      %753 = vmatpush.bf16.msra.mxu0 %v723
      %754 = vmatpush.bf16.msra.mxu0 %v721
      %755 = vmatpush.bf16.msra.mxu0 %v719
      %756 = vmatpush.bf16.msra.mxu0 %v717
      %757 = vmatmul.bf16.gmra.mxu0 %v733
      %v758 = vpop.f32.mrf.mxu0
      %v759 = vadd.f32 0.0, %v758
      %v760 = vpop.f32.mrf.mxu0
      %v761 = vadd.f32 0.0, %v760
      %762 = vdwg.mxu0
      %v763 = vpack.c.bf16 %v745, %v745
      %v764 = vpack.c.bf16 %v747, %v747
      %v765 = vpack.c.bf16 %v759, %v759
      %v766 = vpack.c.bf16 %v761, %v761
      %v767 = vlaneseq
      %v768 = vshrl.u32 %v767, 7
      %v769 = vadd.s32 %v768, 8
      %v770 = vlaneseq
      %v771 = vand.u32 %v770, 127
      %vm772 = vcmp.le.s32.totalorder %v771, %v768
      %vm773 = vcmp.le.s32.totalorder %v771, %v769
      %v774 = vsel %vm772, 0.0, -1e+30
      %v775 = vsel %vm773, 0.0, -1e+30
      %v778 = vunpack.c.l.b16 %v763
      %v779 = vunpack.c.l.b16 %v764
      %v780 = vpack.c.b16 %v779, %v778
      %781 = vrot.lane.b32.xlu0 %v780, 64
      %v782 = vpop.permute.xlu0 %781
      %vm783 = vcmask 130048
      %v785 = vsel %vm783, %v780, 0
      %v788 = vsel %vm783, %v782, 0
      %790 = vmatpush.bf16.xpose.msra.mxu0 0
      %791 = vmatpush.bf16.xpose.msra.mxu0 0
      %792 = vmatpush.bf16.xpose.msra.mxu0 0
      %793 = vmatpush.bf16.xpose.msra.mxu0 0
      %794 = vmatpush.bf16.xpose.msra.mxu0 0
      %795 = vmatpush.bf16.xpose.msra.mxu0 0
      %796 = vmatpush.bf16.xpose.msra.mxu0 0
      %797 = vmatpush.bf16.xpose.msra.mxu0 %v788
      %798 = vmatmul.bf16.gmra.mxu0 %v785
      %v799 = vpop.f32.mrf.mxu0
      %v800 = vadd.f32 %v774, %v799
      %v801 = vpop.f32.mrf.mxu0
      %v802 = vadd.f32 %v775, %v801
      %803 = vdwg.mxu0
      %v804 = vsel %vm783, %v800, -inf
      %805 = vmax.xlane.f32.xlu0 %v804
      %v806 = vpop.xlane.xlu0 %805
      %v807 = vsel %vm783, %v802, -inf
      %808 = vmax.xlane.f32.xlu0 %v807
      %v809 = vpop.xlane.xlu0 %808
      %v810 = vsub.f32 %v800, %v806
      %v811 = vsub.f32 %v802, %v809
      %v812 = vmul.f32 %v810, 1.442695
      %v813 = vpow.pop %v812
      %v814 = vmul.f32 %v811, 1.442695
      %v815 = vpow.pop %v814
      %v816 = vsel %vm783, %v813, 0.0
      %817 = vadd.xlane.f32.xlu0 %v816
      %v818 = vpop.xlane.xlu0 %817
      %v819 = vsel %vm783, %v815, 0.0
      %820 = vadd.xlane.f32.xlu0 %v819
      %v821 = vpop.xlane.xlu0 %820
      %v822 = vrcp.pop %v818
      %v823 = vrcp.pop %v821
      %v824 = vmul.f32 %v813, %v822
      %v825 = vmul.f32 %v815, %v823
      %v826 = vpack.c.bf16 %v824, %v824
      %v827 = vpack.c.bf16 %v825, %v825
      %v830 = vunpack.c.l.b16 %v826
      %v831 = vunpack.c.l.b16 %v827
      %v832 = vpack.c.b16 %v831, %v830
      %v835 = vunpack.c.l.b16 %v765
      %v836 = vunpack.c.l.b16 %v766
      %v837 = vpack.c.b16 %v836, %v835
      %v840 = vsel %vm783, %v832, 0
      %842 = vmatpush.bf16.msra.mxu0 0
      %843 = vmatpush.bf16.msra.mxu0 0
      %844 = vmatpush.bf16.msra.mxu0 0
      %845 = vmatpush.bf16.msra.mxu0 0
      %846 = vmatpush.bf16.msra.mxu0 0
      %847 = vmatpush.bf16.msra.mxu0 0
      %848 = vmatpush.bf16.msra.mxu0 0
      %849 = vmatpush.bf16.msra.mxu0 %v837
      %850 = vmatmul.bf16.gmra.mxu0 %v840
      %v851 = vpop.f32.mrf.mxu0
      %v852 = vadd.f32 0.0, %v851
      %v853 = vpop.f32.mrf.mxu0
      %v854 = vadd.f32 0.0, %v853
      %855 = vdwg.mxu0
      %v856 = vpack.c.bf16 %v852, %v852
      %v857 = vpack.c.bf16 %v854, %v854
      %vm858 = vcmask 125952
      %859 = vst.msk [vmem:[#allocation3] sm:$0xf] %vm858, %v856
      %860 = vst.msk [vmem:[#allocation3 + $0x4] sm:$0xf] %vm858, %v857
      %861 = vrot.lane.b32.xlu0 %v780, 112
      %v862 = vpop.permute.xlu0 %861
      %863 = vrot.lane.b32.xlu0 %v780, 48
      %v864 = vpop.permute.xlu0 %863
      %v866 = vsel %vm783, %v862, 0
      %v869 = vsel %vm783, %v864, 0
      %871 = vmatpush.bf16.xpose.msra.mxu0 0
      %872 = vmatpush.bf16.xpose.msra.mxu0 0
      %873 = vmatpush.bf16.xpose.msra.mxu0 0
      %874 = vmatpush.bf16.xpose.msra.mxu0 0
      %875 = vmatpush.bf16.xpose.msra.mxu0 0
      %876 = vmatpush.bf16.xpose.msra.mxu0 0
      %877 = vmatpush.bf16.xpose.msra.mxu0 0
      %878 = vmatpush.bf16.xpose.msra.mxu0 %v869
      %879 = vmatmul.bf16.gmra.mxu0 %v866
      %v880 = vpop.f32.mrf.mxu0
      %v881 = vadd.f32 %v774, %v880
      %v882 = vpop.f32.mrf.mxu0
      %v883 = vadd.f32 %v775, %v882
      %884 = vdwg.mxu0
      %v885 = vsel %vm783, %v881, -inf
      %886 = vmax.xlane.f32.xlu0 %v885
      %v887 = vpop.xlane.xlu0 %886
      %v888 = vsel %vm783, %v883, -inf
      %889 = vmax.xlane.f32.xlu0 %v888
      %v890 = vpop.xlane.xlu0 %889
      %v891 = vsub.f32 %v881, %v887
      %v892 = vsub.f32 %v883, %v890
      %v893 = vmul.f32 %v891, 1.442695
      %v894 = vpow.pop %v893
      %v895 = vmul.f32 %v892, 1.442695
      %v896 = vpow.pop %v895
      %v897 = vsel %vm783, %v894, 0.0
      %898 = vadd.xlane.f32.xlu0 %v897
      %v899 = vpop.xlane.xlu0 %898
      %v900 = vsel %vm783, %v896, 0.0
      %901 = vadd.xlane.f32.xlu0 %v900
      %v902 = vpop.xlane.xlu0 %901
      %v903 = vrcp.pop %v899
      %v904 = vrcp.pop %v902
      %v905 = vmul.f32 %v894, %v903
      %v906 = vmul.f32 %v896, %v904
      %v907 = vpack.c.bf16 %v905, %v905
      %v908 = vpack.c.bf16 %v906, %v906
      %v911 = vunpack.c.l.b16 %v907
      %v912 = vunpack.c.l.b16 %v908
      %v913 = vpack.c.b16 %v912, %v911
      %914 = vrot.lane.b32.xlu0 %v837, 112
      %v915 = vpop.permute.xlu0 %914
      %v918 = vsel %vm783, %v913, 0
      %920 = vmatpush.bf16.msra.mxu0 0
      %921 = vmatpush.bf16.msra.mxu0 0
      %922 = vmatpush.bf16.msra.mxu0 0
      %923 = vmatpush.bf16.msra.mxu0 0
      %924 = vmatpush.bf16.msra.mxu0 0
      %925 = vmatpush.bf16.msra.mxu0 0
      %926 = vmatpush.bf16.msra.mxu0 0
      %927 = vmatpush.bf16.msra.mxu0 %v915
      %928 = vmatmul.bf16.gmra.mxu0 %v918
      %v929 = vpop.f32.mrf.mxu0
      %v930 = vadd.f32 0.0, %v929
      %v931 = vpop.f32.mrf.mxu0
      %v932 = vadd.f32 0.0, %v931
      %933 = vdwg.mxu0
      %v934 = vpack.c.bf16 %v930, %v930
      %v935 = vpack.c.bf16 %v932, %v932
      %938 = vrot.lane.b32.xlu0 %v934, 16
      %v939 = vpop.permute.xlu0 %938
      %940 = vrot.lane.b32.xlu0 %v935, 16
      %v941 = vpop.permute.xlu0 %940
      %vm944 = vcmask 257152
      %945 = vst.msk [vmem:[#allocation3] sm:$0xf] %vm944, %v939
      %946 = vst.msk [vmem:[#allocation3 + $0x4] sm:$0xf] %vm944, %v941
      %947 = vrot.lane.b32.xlu0 %v780, 96
      %v948 = vpop.permute.xlu0 %947
      %949 = vrot.lane.b32.xlu0 %v780, 32
      %v950 = vpop.permute.xlu0 %949
      %v952 = vsel %vm783, %v948, 0
      %v955 = vsel %vm783, %v950, 0
      %957 = vmatpush.bf16.xpose.msra.mxu0 0
      %958 = vmatpush.bf16.xpose.msra.mxu0 0
      %959 = vmatpush.bf16.xpose.msra.mxu0 0
      %960 = vmatpush.bf16.xpose.msra.mxu0 0
      %961 = vmatpush.bf16.xpose.msra.mxu0 0
      %962 = vmatpush.bf16.xpose.msra.mxu0 0
      %963 = vmatpush.bf16.xpose.msra.mxu0 0
      %964 = vmatpush.bf16.xpose.msra.mxu0 %v955
      %965 = vmatmul.bf16.gmra.mxu0 %v952
      %v966 = vpop.f32.mrf.mxu0
      %v967 = vadd.f32 %v774, %v966
      %v968 = vpop.f32.mrf.mxu0
      %v969 = vadd.f32 %v775, %v968
      %970 = vdwg.mxu0
      %v971 = vsel %vm783, %v967, -inf
      %972 = vmax.xlane.f32.xlu0 %v971
      %v973 = vpop.xlane.xlu0 %972
      %v974 = vsel %vm783, %v969, -inf
      %975 = vmax.xlane.f32.xlu0 %v974
      %v976 = vpop.xlane.xlu0 %975
      %v977 = vsub.f32 %v967, %v973
      %v978 = vsub.f32 %v969, %v976
      %v979 = vmul.f32 %v977, 1.442695
      %v980 = vpow.pop %v979
      %v981 = vmul.f32 %v978, 1.442695
      %v982 = vpow.pop %v981
      %v983 = vsel %vm783, %v980, 0.0
      %984 = vadd.xlane.f32.xlu0 %v983
      %v985 = vpop.xlane.xlu0 %984
      %v986 = vsel %vm783, %v982, 0.0
      %987 = vadd.xlane.f32.xlu0 %v986
      %v988 = vpop.xlane.xlu0 %987
      %v989 = vrcp.pop %v985
      %v990 = vrcp.pop %v988
      %v991 = vmul.f32 %v980, %v989
      %v992 = vmul.f32 %v982, %v990
      %v993 = vpack.c.bf16 %v991, %v991
      %v994 = vpack.c.bf16 %v992, %v992
      %v997 = vunpack.c.l.b16 %v993
      %v998 = vunpack.c.l.b16 %v994
      %v999 = vpack.c.b16 %v998, %v997
      %1000 = vrot.lane.b32.xlu0 %v837, 96
      %v1001 = vpop.permute.xlu0 %1000
      %v1004 = vsel %vm783, %v999, 0
      %1006 = vmatpush.bf16.msra.mxu0 0
      %1007 = vmatpush.bf16.msra.mxu0 0
      %1008 = vmatpush.bf16.msra.mxu0 0
      %1009 = vmatpush.bf16.msra.mxu0 0
      %1010 = vmatpush.bf16.msra.mxu0 0
      %1011 = vmatpush.bf16.msra.mxu0 0
      %1012 = vmatpush.bf16.msra.mxu0 0
      %1013 = vmatpush.bf16.msra.mxu0 %v1001
      %1014 = vmatmul.bf16.gmra.mxu0 %v1004
      %v1015 = vpop.f32.mrf.mxu0
      %v1016 = vadd.f32 0.0, %v1015
      %v1017 = vpop.f32.mrf.mxu0
      %v1018 = vadd.f32 0.0, %v1017
      %1019 = vdwg.mxu0
      %v1020 = vpack.c.bf16 %v1016, %v1016
      %v1021 = vpack.c.bf16 %v1018, %v1018
      %1024 = vrot.lane.b32.xlu0 %v1020, 32
      %v1025 = vpop.permute.xlu0 %1024
      %1026 = vrot.lane.b32.xlu0 %v1021, 32
      %v1027 = vpop.permute.xlu0 %1026
      %vm1030 = vcmask 388352
      %1031 = vst.msk [vmem:[#allocation3] sm:$0xf] %vm1030, %v1025
      %1032 = vst.msk [vmem:[#allocation3 + $0x4] sm:$0xf] %vm1030, %v1027
      %1033 = vrot.lane.b32.xlu0 %v780, 80
      %v1034 = vpop.permute.xlu0 %1033
      %1035 = vrot.lane.b32.xlu0 %v780, 16
      %v1036 = vpop.permute.xlu0 %1035
      %v1038 = vsel %vm783, %v1034, 0
      %v1041 = vsel %vm783, %v1036, 0
      %1043 = vmatpush.bf16.xpose.msra.mxu0 0
      %1044 = vmatpush.bf16.xpose.msra.mxu0 0
      %1045 = vmatpush.bf16.xpose.msra.mxu0 0
      %1046 = vmatpush.bf16.xpose.msra.mxu0 0
      %1047 = vmatpush.bf16.xpose.msra.mxu0 0
      %1048 = vmatpush.bf16.xpose.msra.mxu0 0
      %1049 = vmatpush.bf16.xpose.msra.mxu0 0
      %1050 = vmatpush.bf16.xpose.msra.mxu0 %v1041
      %1051 = vmatmul.bf16.gmra.mxu0 %v1038
      %v1052 = vpop.f32.mrf.mxu0
      %v1053 = vadd.f32 %v774, %v1052
      %v1054 = vpop.f32.mrf.mxu0
      %v1055 = vadd.f32 %v775, %v1054
      %1056 = vdwg.mxu0
      %v1057 = vsel %vm783, %v1053, -inf
      %1058 = vmax.xlane.f32.xlu0 %v1057
      %v1059 = vpop.xlane.xlu0 %1058
      %v1060 = vsel %vm783, %v1055, -inf
      %1061 = vmax.xlane.f32.xlu0 %v1060
      %v1062 = vpop.xlane.xlu0 %1061
      %v1063 = vsub.f32 %v1053, %v1059
      %v1064 = vsub.f32 %v1055, %v1062
      %v1065 = vmul.f32 %v1063, 1.442695
      %v1066 = vpow.pop %v1065
      %v1067 = vmul.f32 %v1064, 1.442695
      %v1068 = vpow.pop %v1067
      %v1069 = vsel %vm783, %v1066, 0.0
      %1070 = vadd.xlane.f32.xlu0 %v1069
      %v1071 = vpop.xlane.xlu0 %1070
      %v1072 = vsel %vm783, %v1068, 0.0
      %1073 = vadd.xlane.f32.xlu0 %v1072
      %v1074 = vpop.xlane.xlu0 %1073
      %v1075 = vrcp.pop %v1071
      %v1076 = vrcp.pop %v1074
      %v1077 = vmul.f32 %v1066, %v1075
      %v1078 = vmul.f32 %v1068, %v1076
      %v1079 = vpack.c.bf16 %v1077, %v1077
      %v1080 = vpack.c.bf16 %v1078, %v1078
      %v1083 = vunpack.c.l.b16 %v1079
      %v1084 = vunpack.c.l.b16 %v1080
      %v1085 = vpack.c.b16 %v1084, %v1083
      %1086 = vrot.lane.b32.xlu0 %v837, 80
      %v1087 = vpop.permute.xlu0 %1086
      %v1090 = vsel %vm783, %v1085, 0
      %1092 = vmatpush.bf16.msra.mxu0 0
      %1093 = vmatpush.bf16.msra.mxu0 0
      %1094 = vmatpush.bf16.msra.mxu0 0
      %1095 = vmatpush.bf16.msra.mxu0 0
      %1096 = vmatpush.bf16.msra.mxu0 0
      %1097 = vmatpush.bf16.msra.mxu0 0
      %1098 = vmatpush.bf16.msra.mxu0 0
      %1099 = vmatpush.bf16.msra.mxu0 %v1087
      %1100 = vmatmul.bf16.gmra.mxu0 %v1090
      %v1101 = vpop.f32.mrf.mxu0
      %v1102 = vadd.f32 0.0, %v1101
      %v1103 = vpop.f32.mrf.mxu0
      %v1104 = vadd.f32 0.0, %v1103
      %1105 = vdwg.mxu0
      %v1106 = vpack.c.bf16 %v1102, %v1102
      %v1107 = vpack.c.bf16 %v1104, %v1104
      %1110 = vrot.lane.b32.xlu0 %v1106, 48
      %v1111 = vpop.permute.xlu0 %1110
      %1112 = vrot.lane.b32.xlu0 %v1107, 48
      %v1113 = vpop.permute.xlu0 %1112
      %vm1116 = vcmask 519552
      %1117 = vst.msk [vmem:[#allocation3] sm:$0xf] %vm1116, %v1111
      %1118 = vst.msk [vmem:[#allocation3 + $0x4] sm:$0xf] %vm1116, %v1113
      %v1119 = vld [vmem:[#allocation3] sm:$0xf]
      %v1120 = vld [vmem:[#allocation3 + $0x4] sm:$0xf]
      %v1121 = vld [vmem:[%s575] sm:$0xf]
      %v1122 = vld [vmem:[%s575 + $0x4] sm:$0xf]
      %v1123 = vld [vmem:[%s575 + $0x8] sm:$0xf]
      %v1124 = vld [vmem:[%s575 + $0xc] sm:$0xf]
      %v1125 = vld [vmem:[%s575 + $0x10] sm:$0xf]
      %v1126 = vld [vmem:[%s575 + $0x14] sm:$0xf]
      %v1127 = vld [vmem:[%s575 + $0x18] sm:$0xf]
      %v1128 = vld [vmem:[%s575 + $0x1c] sm:$0xf]
      %v1129 = vld [vmem:[%s578] sm:$0x1]
      %v1131 = vperm.slane %v1129, 0
      %v1135 = vunpack.c.l.b16 %v1119
      %v1136 = vunpack.c.l.b16 %v1120
      %v1137 = vpack.c.b16 %v1136, %v1135
      %v1146 = vunpack.c.l.b16 %v1121
      %v1147 = vunpack.c.l.b16 %v1122
      %v1148 = vunpack.c.l.b16 %v1123
      %v1149 = vunpack.c.l.b16 %v1124
      %v1150 = vunpack.c.l.b16 %v1125
      %v1151 = vunpack.c.l.b16 %v1126
      %v1152 = vunpack.c.l.b16 %v1127
      %v1153 = vunpack.c.l.b16 %v1128
      %v1154 = vpack.c.b16 %v1147, %v1146
      %v1155 = vpack.c.b16 %v1149, %v1148
      %v1156 = vpack.c.b16 %v1151, %v1150
      %v1157 = vpack.c.b16 %v1153, %v1152
      %v1163 = vsel %vm621, %v1137, 0
      %1165 = vmatpush.bf16.msra.mxu0 0
      %1166 = vmatpush.bf16.msra.mxu0 0
      %1167 = vmatpush.bf16.msra.mxu0 0
      %1168 = vmatpush.bf16.msra.mxu0 0
      %1169 = vmatpush.bf16.msra.mxu0 %v1157
      %1170 = vmatpush.bf16.msra.mxu0 %v1156
      %1171 = vmatpush.bf16.msra.mxu0 %v1155
      %1172 = vmatpush.bf16.msra.mxu0 %v1154
      %1173 = vmatmul.bf16.gmra.mxu0 %v1163
      %v1174 = vpop.f32.mrf.mxu0
      %v1175 = vadd.f32 %v1131, %v1174
      %v1176 = vpop.f32.mrf.mxu0
      %v1177 = vadd.f32 %v1131, %v1176
      %1178 = vdwg.mxu0
      %v1179 = vadd.f32 %v617, %v1175
      %v1180 = vadd.f32 %v618, %v1177
      %v1181 = vld [vmem:[%s581] sm:$0x1]
      %v1182 = vld [vmem:[%s584] sm:$0x1]
      %v1183 = vsel %vm621, %v1179, 0.0
      %1184 = vadd.xlane.f32.xlu0 %v1183
      %v1185 = vpop.xlane.xlu0 %1184
      %v1186 = vsel %vm621, %v1180, 0.0
      %1187 = vadd.xlane.f32.xlu0 %v1186
      %v1188 = vpop.xlane.xlu0 %1187
      %v1189 = vmul.f32 %v1185, %v634
      %v1190 = vmul.f32 %v1188, %v634
      %v1191 = vsub.f32 %v1179, %v1189
      %v1192 = vsub.f32 %v1180, %v1190
      %v1193 = vmul.f32 %v1191, %v1191
      %v1194 = vmul.f32 %v1192, %v1192
      %v1195 = vsel %vm621, %v1193, 0.0
      %1196 = vadd.xlane.f32.xlu0 %v1195
      %v1197 = vpop.xlane.xlu0 %1196
      %v1198 = vsel %vm621, %v1194, 0.0
      %1199 = vadd.xlane.f32.xlu0 %v1198
      %v1200 = vpop.xlane.xlu0 %1199
      %v1201 = vmul.f32 %v1197, %v634
      %v1202 = vmul.f32 %v1200, %v634
      %v1203 = vadd.f32 %v1201, 1e-05
      %v1204 = vadd.f32 %v1202, 1e-05
      %v1205 = vrsqrt.pop %v1203
      %v1206 = vmul.f32 %v1205, %v1203
      %v1207 = vmul.f32 %v1206, %v1205
      %v1208 = vmul.f32 0.5, %v1207
      %v1209 = vsub.f32 1.5, %v1208
      %v1210 = vmul.f32 %v1205, %v1209
      %vm1211 = vweird.f32 %v1203
      %vm1212 = vweird.f32 %v1205
      %vm1213 = vmor %vm1211, %vm1212
      %v1214 = vsel %vm1213, %v1205, %v1210
      %v1215 = vrsqrt.pop %v1204
      %v1216 = vmul.f32 %v1215, %v1204
      %v1217 = vmul.f32 %v1216, %v1215
      %v1218 = vmul.f32 0.5, %v1217
      %v1219 = vsub.f32 1.5, %v1218
      %v1220 = vmul.f32 %v1215, %v1219
      %vm1221 = vweird.f32 %v1204
      %vm1222 = vweird.f32 %v1215
      %vm1223 = vmor %vm1221, %vm1222
      %v1224 = vsel %vm1223, %v1215, %v1220
      %v1225 = vmul.f32 %v1191, %v1214
      %v1226 = vmul.f32 %v1192, %v1224
      %v1228 = vperm.slane %v1181, 0
      %v1230 = vmul.f32 %v1225, %v1228
      %v1231 = vmul.f32 %v1226, %v1228
      %v1233 = vperm.slane %v1182, 0
      %v1235 = vadd.f32 %v1230, %v1233
      %v1236 = vadd.f32 %v1231, %v1233
      %v1237 = vpack.c.bf16 %v1236, %v1235
      %v1238 = vld [vmem:[%s589] sm:$0xf]
      %v1239 = vld [vmem:[%s589 + $0x8] sm:$0xf]
      %v1240 = vld [vmem:[%s589 + $0x10] sm:$0xf]
      %v1241 = vld [vmem:[%s589 + $0x18] sm:$0xf]
      %v1242 = vld [vmem:[%s589 + $0x20] sm:$0xf]
      %v1243 = vld [vmem:[%s589 + $0x28] sm:$0xf]
      %v1244 = vld [vmem:[%s589 + $0x30] sm:$0xf]
      %v1245 = vld [vmem:[%s589 + $0x38] sm:$0xf]
      %v1246 = vld [vmem:[%s593] sm:$0x1]
      %v1248 = vperm.slane %v1246, 0
      %v1258 = vunpack.c.l.b16 %v1238
      %v1259 = vunpack.c.l.b16 %v1239
      %v1260 = vunpack.c.l.b16 %v1240
      %v1261 = vunpack.c.l.b16 %v1241
      %v1262 = vunpack.c.l.b16 %v1242
      %v1263 = vunpack.c.l.b16 %v1243
      %v1264 = vunpack.c.l.b16 %v1244
      %v1265 = vunpack.c.l.b16 %v1245
      %v1266 = vpack.c.b16 %v1259, %v1258
      %v1267 = vpack.c.b16 %v1261, %v1260
      %v1268 = vpack.c.b16 %v1263, %v1262
      %v1269 = vpack.c.b16 %v1265, %v1264
      %v1275 = vsel %vm621, %v1237, 0
      %1277 = vmatpush.bf16.msra.mxu0 0
      %1278 = vmatpush.bf16.msra.mxu0 0
      %1279 = vmatpush.bf16.msra.mxu0 0
      %1280 = vmatpush.bf16.msra.mxu0 0
      %1281 = vmatpush.bf16.msra.mxu0 %v1269
      %1282 = vmatpush.bf16.msra.mxu0 %v1268
      %1283 = vmatpush.bf16.msra.mxu0 %v1267
      %1284 = vmatpush.bf16.msra.mxu0 %v1266
      %1285 = vmatmul.bf16.gmra.mxu0 %v1275
      %v1286 = vpop.f32.mrf.mxu0
      %v1287 = vadd.f32 %v1248, %v1286
      %v1288 = vpop.f32.mrf.mxu0
      %v1289 = vadd.f32 %v1248, %v1288
      %1290 = vdwg.mxu0
      %v1291 = vmul.f32 %v1287, 1.702
      %v1292 = vmul.f32 %v1289, 1.702
      %v1293 = vxor.u32 %v1291, 2147483648
      %v1294 = vxor.u32 %v1292, 2147483648
      %v1295 = vmul.f32 %v1293, 1.442695
      %v1296 = vpow.pop %v1295
      %v1297 = vmul.f32 %v1294, 1.442695
      %v1298 = vpow.pop %v1297
      %v1299 = vadd.f32 %v1296, 1.0
      %v1300 = vadd.f32 %v1298, 1.0
      %v1301 = vrcp.pop %v1299
      %v1302 = vmul.f32 %v1299, %v1301
      %v1303 = vsub.f32 1.0, %v1302
      %v1304 = vmul.f32 %v1301, %v1303
      %v1305 = vadd.f32 %v1301, %v1304
      %vm1306 = vweird.f32 %v1299
      %vm1307 = vweird.f32 %v1301
      %vm1308 = vmor %vm1306, %vm1307
      %v1309 = vsel %vm1308, %v1301, %v1305
      %v1310 = vand.u32 2147483647, %v1299
      %vm1311 = vcmp.eq.f32.partialorder %v1310, 8.507059e+37
      %v1312 = vand.u32 %v1299, 2147483648
      %v1313 = vor.u32 1.1754944e-38, %v1312
      %v1314 = vsel %vm1311, %v1313, %v1309
      %v1315 = vmul.f32 1.0, %v1314
      %v1316 = vrcp.pop %v1300
      %v1317 = vmul.f32 %v1300, %v1316
      %v1318 = vsub.f32 1.0, %v1317
      %v1319 = vmul.f32 %v1316, %v1318
      %v1320 = vadd.f32 %v1316, %v1319
      %vm1321 = vweird.f32 %v1300
      %vm1322 = vweird.f32 %v1316
      %vm1323 = vmor %vm1321, %vm1322
      %v1324 = vsel %vm1323, %v1316, %v1320
      %v1325 = vand.u32 2147483647, %v1300
      %vm1326 = vcmp.eq.f32.partialorder %v1325, 8.507059e+37
      %v1327 = vand.u32 %v1300, 2147483648
      %v1328 = vor.u32 1.1754944e-38, %v1327
      %v1329 = vsel %vm1326, %v1328, %v1324
      %v1330 = vmul.f32 1.0, %v1329
      %v1331 = vmul.f32 %v1287, %v1315
      %v1332 = vmul.f32 %v1289, %v1330
      %v1333 = vpack.c.bf16 %v1332, %v1331
      %v1334 = vld [vmem:[%s598] sm:$0xf]
      %v1335 = vld [vmem:[%s598 + $0x4] sm:$0xf]
      %v1336 = vld [vmem:[%s598 + $0x8] sm:$0xf]
      %v1337 = vld [vmem:[%s598 + $0xc] sm:$0xf]
      %v1338 = vld [vmem:[%s598 + $0x10] sm:$0xf]
      %v1339 = vld [vmem:[%s598 + $0x14] sm:$0xf]
      %v1340 = vld [vmem:[%s598 + $0x18] sm:$0xf]
      %v1341 = vld [vmem:[%s598 + $0x1c] sm:$0xf]
      %v1342 = vld [vmem:[%s598 + $0x20] sm:$0xf]
      %v1343 = vld [vmem:[%s598 + $0x24] sm:$0xf]
      %v1344 = vld [vmem:[%s598 + $0x28] sm:$0xf]
      %v1345 = vld [vmem:[%s598 + $0x2c] sm:$0xf]
      %v1346 = vld [vmem:[%s598 + $0x30] sm:$0xf]
      %v1347 = vld [vmem:[%s598 + $0x34] sm:$0xf]
      %v1348 = vld [vmem:[%s598 + $0x38] sm:$0xf]
      %v1349 = vld [vmem:[%s598 + $0x3c] sm:$0xf]
      %v1350 = vld [vmem:[%s589 + $0x4] sm:$0xf]
      %v1351 = vld [vmem:[%s589 + $0xc] sm:$0xf]
      %v1352 = vld [vmem:[%s589 + $0x14] sm:$0xf]
      %v1353 = vld [vmem:[%s589 + $0x1c] sm:$0xf]
      %v1354 = vld [vmem:[%s589 + $0x24] sm:$0xf]
      %v1355 = vld [vmem:[%s589 + $0x2c] sm:$0xf]
      %v1356 = vld [vmem:[%s589 + $0x34] sm:$0xf]
      %v1357 = vld [vmem:[%s589 + $0x3c] sm:$0xf]
      %v1358 = vld [vmem:[%s593 + $0x1] sm:$0x1]
      %v1360 = vperm.slane %v1358, 0
      %v1370 = vunpack.c.l.b16 %v1350
      %v1371 = vunpack.c.l.b16 %v1351
      %v1372 = vunpack.c.l.b16 %v1352
      %v1373 = vunpack.c.l.b16 %v1353
      %v1374 = vunpack.c.l.b16 %v1354
      %v1375 = vunpack.c.l.b16 %v1355
      %v1376 = vunpack.c.l.b16 %v1356
      %v1377 = vunpack.c.l.b16 %v1357
      %v1378 = vpack.c.b16 %v1371, %v1370
      %v1379 = vpack.c.b16 %v1373, %v1372
      %v1380 = vpack.c.b16 %v1375, %v1374
      %v1381 = vpack.c.b16 %v1377, %v1376
      %1386 = vmatpush.bf16.msra.mxu0 0
      %1387 = vmatpush.bf16.msra.mxu0 0
      %1388 = vmatpush.bf16.msra.mxu0 0
      %1389 = vmatpush.bf16.msra.mxu0 0
      %1390 = vmatpush.bf16.msra.mxu0 %v1381
      %1391 = vmatpush.bf16.msra.mxu0 %v1380
      %1392 = vmatpush.bf16.msra.mxu0 %v1379
      %1393 = vmatpush.bf16.msra.mxu0 %v1378
      %1394 = vmatmul.bf16.gmra.mxu0 %v1275
      %v1395 = vpop.f32.mrf.mxu0
      %v1396 = vadd.f32 %v1360, %v1395
      %v1397 = vpop.f32.mrf.mxu0
      %v1398 = vadd.f32 %v1360, %v1397
      %1399 = vdwg.mxu0
      %v1400 = vmul.f32 %v1396, 1.702
      %v1401 = vmul.f32 %v1398, 1.702
      %v1402 = vxor.u32 %v1400, 2147483648
      %v1403 = vxor.u32 %v1401, 2147483648
      %v1404 = vmul.f32 %v1402, 1.442695
      %v1405 = vpow.pop %v1404
      %v1406 = vmul.f32 %v1403, 1.442695
      %v1407 = vpow.pop %v1406
      %v1408 = vadd.f32 %v1405, 1.0
      %v1409 = vadd.f32 %v1407, 1.0
      %v1410 = vrcp.pop %v1408
      %v1411 = vmul.f32 %v1408, %v1410
      %v1412 = vsub.f32 1.0, %v1411
      %v1413 = vmul.f32 %v1410, %v1412
      %v1414 = vadd.f32 %v1410, %v1413
      %vm1415 = vweird.f32 %v1408
      %vm1416 = vweird.f32 %v1410
      %vm1417 = vmor %vm1415, %vm1416
      %v1418 = vsel %vm1417, %v1410, %v1414
      %v1419 = vand.u32 2147483647, %v1408
      %vm1420 = vcmp.eq.f32.partialorder %v1419, 8.507059e+37
      %v1421 = vand.u32 %v1408, 2147483648
      %v1422 = vor.u32 1.1754944e-38, %v1421
      %v1423 = vsel %vm1420, %v1422, %v1418
      %v1424 = vmul.f32 1.0, %v1423
      %v1425 = vrcp.pop %v1409
      %v1426 = vmul.f32 %v1409, %v1425
      %v1427 = vsub.f32 1.0, %v1426
      %v1428 = vmul.f32 %v1425, %v1427
      %v1429 = vadd.f32 %v1425, %v1428
      %vm1430 = vweird.f32 %v1409
      %vm1431 = vweird.f32 %v1425
      %vm1432 = vmor %vm1430, %vm1431
      %v1433 = vsel %vm1432, %v1425, %v1429
      %v1434 = vand.u32 2147483647, %v1409
      %vm1435 = vcmp.eq.f32.partialorder %v1434, 8.507059e+37
      %v1436 = vand.u32 %v1409, 2147483648
      %v1437 = vor.u32 1.1754944e-38, %v1436
      %v1438 = vsel %vm1435, %v1437, %v1433
      %v1439 = vmul.f32 1.0, %v1438
      %v1440 = vmul.f32 %v1396, %v1424
      %v1441 = vmul.f32 %v1398, %v1439
      %v1442 = vpack.c.bf16 %v1441, %v1440
      %v1443 = vld [vmem:[%s598 + $0x40] sm:$0xf]
      %v1444 = vld [vmem:[%s598 + $0x44] sm:$0xf]
      %v1445 = vld [vmem:[%s598 + $0x48] sm:$0xf]
      %v1446 = vld [vmem:[%s598 + $0x4c] sm:$0xf]
      %v1447 = vld [vmem:[%s598 + $0x50] sm:$0xf]
      %v1448 = vld [vmem:[%s598 + $0x54] sm:$0xf]
      %v1449 = vld [vmem:[%s598 + $0x58] sm:$0xf]
      %v1450 = vld [vmem:[%s598 + $0x5c] sm:$0xf]
      %v1451 = vld [vmem:[%s598 + $0x60] sm:$0xf]
      %v1452 = vld [vmem:[%s598 + $0x64] sm:$0xf]
      %v1453 = vld [vmem:[%s598 + $0x68] sm:$0xf]
      %v1454 = vld [vmem:[%s598 + $0x6c] sm:$0xf]
      %v1455 = vld [vmem:[%s598 + $0x70] sm:$0xf]
      %v1456 = vld [vmem:[%s598 + $0x74] sm:$0xf]
      %v1457 = vld [vmem:[%s598 + $0x78] sm:$0xf]
      %v1458 = vld [vmem:[%s598 + $0x7c] sm:$0xf]
      %v1475 = vunpack.c.l.b16 %v1443
      %v1476 = vunpack.c.l.b16 %v1444
      %v1477 = vunpack.c.l.b16 %v1445
      %v1478 = vunpack.c.l.b16 %v1446
      %v1479 = vunpack.c.l.b16 %v1447
      %v1480 = vunpack.c.l.b16 %v1448
      %v1481 = vunpack.c.l.b16 %v1449
      %v1482 = vunpack.c.l.b16 %v1450
      %v1483 = vunpack.c.l.b16 %v1451
      %v1484 = vunpack.c.l.b16 %v1452
      %v1485 = vunpack.c.l.b16 %v1453
      %v1486 = vunpack.c.l.b16 %v1454
      %v1487 = vunpack.c.l.b16 %v1455
      %v1488 = vunpack.c.l.b16 %v1456
      %v1489 = vunpack.c.l.b16 %v1457
      %v1490 = vunpack.c.l.b16 %v1458
      %v1491 = vpack.c.b16 %v1476, %v1475
      %v1492 = vpack.c.b16 %v1478, %v1477
      %v1493 = vpack.c.b16 %v1480, %v1479
      %v1494 = vpack.c.b16 %v1482, %v1481
      %v1495 = vpack.c.b16 %v1484, %v1483
      %v1496 = vpack.c.b16 %v1486, %v1485
      %v1497 = vpack.c.b16 %v1488, %v1487
      %v1498 = vpack.c.b16 %v1490, %v1489
      %1507 = vmatpush.bf16.msra.mxu0 %v1498
      %1508 = vmatpush.bf16.msra.mxu0 %v1497
      %1509 = vmatpush.bf16.msra.mxu0 %v1496
      %1510 = vmatpush.bf16.msra.mxu0 %v1495
      %1511 = vmatpush.bf16.msra.mxu0 %v1494
      %1512 = vmatpush.bf16.msra.mxu0 %v1493
      %1513 = vmatpush.bf16.msra.mxu0 %v1492
      %1514 = vmatpush.bf16.msra.mxu0 %v1491
      %1515 = vmatmul.bf16.gmra.mxu0 %v1442
      %v1516 = vpop.f32.mrf.mxu0
      %v1517 = vadd.f32 0.0, %v1516
      %v1518 = vpop.f32.mrf.mxu0
      %v1519 = vadd.f32 0.0, %v1518
      %1520 = vdwg.mxu0
      %v1537 = vunpack.c.l.b16 %v1334
      %v1538 = vunpack.c.l.b16 %v1335
      %v1539 = vunpack.c.l.b16 %v1336
      %v1540 = vunpack.c.l.b16 %v1337
      %v1541 = vunpack.c.l.b16 %v1338
      %v1542 = vunpack.c.l.b16 %v1339
      %v1543 = vunpack.c.l.b16 %v1340
      %v1544 = vunpack.c.l.b16 %v1341
      %v1545 = vunpack.c.l.b16 %v1342
      %v1546 = vunpack.c.l.b16 %v1343
      %v1547 = vunpack.c.l.b16 %v1344
      %v1548 = vunpack.c.l.b16 %v1345
      %v1549 = vunpack.c.l.b16 %v1346
      %v1550 = vunpack.c.l.b16 %v1347
      %v1551 = vunpack.c.l.b16 %v1348
      %v1552 = vunpack.c.l.b16 %v1349
      %v1553 = vpack.c.b16 %v1538, %v1537
      %v1554 = vpack.c.b16 %v1540, %v1539
      %v1555 = vpack.c.b16 %v1542, %v1541
      %v1556 = vpack.c.b16 %v1544, %v1543
      %v1557 = vpack.c.b16 %v1546, %v1545
      %v1558 = vpack.c.b16 %v1548, %v1547
      %v1559 = vpack.c.b16 %v1550, %v1549
      %v1560 = vpack.c.b16 %v1552, %v1551
      %1569 = vmatpush.bf16.msra.mxu0 %v1560
      %1570 = vmatpush.bf16.msra.mxu0 %v1559
      %1571 = vmatpush.bf16.msra.mxu0 %v1558
      %1572 = vmatpush.bf16.msra.mxu0 %v1557
      %1573 = vmatpush.bf16.msra.mxu0 %v1556
      %1574 = vmatpush.bf16.msra.mxu0 %v1555
      %1575 = vmatpush.bf16.msra.mxu0 %v1554
      %1576 = vmatpush.bf16.msra.mxu0 %v1553
      %1577 = vmatmul.bf16.gmra.mxu0 %v1333
      %v1578 = vpop.f32.mrf.mxu0
      %v1579 = vadd.f32 %v1517, %v1578
      %v1580 = vpop.f32.mrf.mxu0
      %v1581 = vadd.f32 %v1519, %v1580
      %1582 = vdwg.mxu0
      %v1583 = vadd.f32 %v1179, %v1579
      %v1584 = vadd.f32 %v1180, %v1581
      %v1585 = vld [vmem:[%s601] sm:$0x1]
      %v1587 = vperm.slane %v1585, 0
      %v1589 = vadd.f32 %v1583, %v1587
      %v1590 = vadd.f32 %v1584, %v1587
      %1591 = vst.msk [vmem:[#allocation2] sm:$0xff] %vm621, %v1589
      %1592 = vst.msk [vmem:[#allocation2 + $0x8] sm:$0xff] %vm621, %v1590
      %p1593 = scmp.eq.s32.totalorder %s28, 1
      // Predicated region
      $region73: #{clip_forward.1} parent=67 // pred_check
        %p1594 = pneg %p1593
      $region74: #{clip_forward.1} parent=67 // pred_check_branch
        %1596 = sbr.rel (%p1594) target = $region76
      $region75: #{clip_forward.1} parent=67 // pred_region
        %1597 = vst.msk [vmem:[%s606] sm:$0xff] %vm621, %v1589
        %1598 = vst.msk [vmem:[%s606 + $0x8] sm:$0xff] %vm621, %v1590
      $region76: #{clip_forward.1} parent=67 // pred_fallthru
        _
      %p1599 = scmp.lt.s32.totalorder %s27, 1
      %s1600 = scalar_select %p1599, %s27, 1
      %s1601 = smul.addr %s1600, 2
      %s1602 = smul.addr %s1601, 8
      %s1603 = scalar_lea.vmem %s12, %s1602
      // Predicated region
      $region77: #{clip_forward.1} parent=67 // pred_check
        %p1604 = pneg %p365
      $region78: #{clip_forward.1} parent=67 // pred_check_branch
        %1606 = sbr.rel (%p1604) target = $region80
      $region79: #{clip_forward.1} parent=67 // pred_region
        _
      $region80: #{clip_forward.1} parent=67 // pred_fallthru
        _
    $region68: #{clip_forward.1} parent=5 // pred_fallthru
      _
    %p1607 = scmp.le.s32.totalorder 2, %s18
    // Predicated region
    $region81: #{clip_forward.1} parent=5 // pred_check
      %p1608 = pneg %p1607
    $region82: #{clip_forward.1} parent=5 // pred_check_branch
      %1610 = sbr.rel (%p1608) target = $region84
    $region83: #{clip_forward.1} parent=5 // pred_region
      %s1611 = ssub.s32 %s18, 2
      // Predicated region
      $region85: #{clip_forward.1} parent=83 // pred_check
        %p1612 = pneg %p371
      $region86: #{clip_forward.1} parent=83 // pred_check_branch
        %1614 = sbr.rel (%p1612) target = $region88
      $region87: #{clip_forward.1} parent=83 // pred_region
        %p1615 = scmp.lt.s32.totalorder %s29, 1
        %s1616 = scalar_select %p1615, %s29, 1
        %s1617 = smul.addr %s1616, 2
        %s1618 = smul.addr %s1617, 8
        %s1619 = scalar_lea.vmem %s12, %s1618
      $region88: #{clip_forward.1} parent=83 // pred_fallthru
        _
    $region84: #{clip_forward.1} parent=5 // pred_fallthru
      _
  $region6: #{clip_forward.1} parent=0 // loop_footer
    %s22 = sadd.s32 1, %s18
  $region7: #{clip_forward.1} parent=0 // loop_footer_branch
    %17 = sbr.rel target = $region3
  $region8: #{clip_forward.1} parent=0 // loop_exit
    _

</llo_original>
